<compile_context>
chip_gen: v7x
topology: tpu7x:2x2x1
jax: 0.10.0
libtpu: 0.0.40
codegen_flags: <defaults>
</compile_context>

<pallas_src>
import functools

import jax
import jax.numpy as jnp
from jax.experimental import pallas as pl
from jax.experimental.pallas import tpu as pltpu

LANE = 128  # TPU lane width: the y output is padded to a multiple of this.


def _leaky_relu(v, slope=0.1):
    return jnp.where(v > 0, v, slope * v)


def mlp_kernel(x_ref,
               w1_ref, b1_ref,
               w2_ref, b2_ref,
               w3_ref, b3_ref,
               wo_ref, bo_ref,
               y_ref, h_ref):
    # In-kernel bf16 cast of x (free filler under MXU slack); f32 accumulation.
    x = x_ref[...].astype(jnp.bfloat16)
    # Hidden layer 1
    h = jnp.dot(x, w1_ref[...], preferred_element_type=jnp.float32)
    h = _leaky_relu(h + b1_ref[...])
    # Hidden layer 2
    h = jnp.dot(h.astype(jnp.bfloat16), w2_ref[...],
                preferred_element_type=jnp.float32)
    h = _leaky_relu(h + b2_ref[...])
    # Hidden layer 3
    h = jnp.dot(h.astype(jnp.bfloat16), w3_ref[...],
                preferred_element_type=jnp.float32)
    h = _leaky_relu(h + b3_ref[...])
    # PyTorch forward returns (y, X) where X is the last hidden activation.
    # Stored in out_dtype (bf16 by default) to halve HBM writeback.
    h_ref[...] = h.astype(h_ref.dtype)
    # Output layer (lane-padded to 128 columns; no nonlinearity).
    y = jnp.dot(h.astype(jnp.bfloat16), wo_ref[...],
                preferred_element_type=jnp.float32)
    y_ref[...] = (y + bo_ref[...]).astype(y_ref.dtype)


@functools.partial(jax.jit, static_argnames=("output_dim", "tm", "out_dtype"))
def mlp_forward(x, params, *, output_dim, tm=512, out_dtype=jnp.bfloat16):
    """params: output of prepare_params (bf16 weights [in,out], f32 biases,
    wo/bo already lane-padded).  Returns (y, h) in out_dtype (bf16 default)."""
    B, D = x.shape
    H = params["w1"].shape[1]
    o_pad = params["wo"].shape[1]

    # Effective row tile: multiple of 16 (bf16 sublane packing), never grossly
    # larger than the batch.  For large B prefer tm | B to avoid the pad copy.
    tm_eff = min(tm, ((B + 15) // 16) * 16)
    tm_eff = max(16, (tm_eff // 16) * 16)
    n_tiles = pl.cdiv(B, tm_eff)
    b_pad = n_tiles * tm_eff
    x_in = x if b_pad == B else jnp.pad(x, ((0, b_pad - B), (0, 0)))

    resident = lambda shape: pl.BlockSpec(shape, lambda i: (0, 0))

    y_full, h_full = pl.pallas_call(
        mlp_kernel,
        out_shape=(
            jax.ShapeDtypeStruct((b_pad, o_pad), out_dtype),
            jax.ShapeDtypeStruct((b_pad, H), out_dtype),
        ),
        grid=(n_tiles,),
        in_specs=[
            pl.BlockSpec((tm_eff, D), lambda i: (i, 0)),   # x: streamed per tile
            resident((D, H)), resident((1, H)),            # layer 1 (VMEM-resident)
            resident((H, H)), resident((1, H)),            # layer 2
            resident((H, H)), resident((1, H)),            # layer 3
            resident((H, o_pad)), resident((1, o_pad)),    # output layer
        ],
        out_specs=(
            pl.BlockSpec((tm_eff, o_pad), lambda i: (i, 0)),  # y (lane-dense)
            pl.BlockSpec((tm_eff, H), lambda i: (i, 0)),      # h
        ),
        compiler_params=pltpu.CompilerParams(
            dimension_semantics=("parallel",),   # megacore sharding (v7x: keep >=2 tiles)
            vmem_limit_bytes=32 * 1024 * 1024,   # safe on v5e/v6e/v7x for tm<=2048
        ),
    )(
        x_in,
        params["w1"], params["b1"],
        params["w2"], params["b2"],
        params["w3"], params["b3"],
        params["wo"], params["bo"],
    )
    return y_full[:B, :output_dim], h_full[:B, :]


def prepare_params(raw, output_dim):
    """One-time layout prep (hoisted out of the per-call path): cast weights to
    bf16 (MXU inputs) and zero-pad the output layer to a 128-lane multiple so
    y stores are unmasked.  Biases stay f32 for the VPU add."""
    H = raw["wo"].shape[0]
    O = output_dim
    o_pad = ((O + LANE - 1) // LANE) * LANE
    wo = jnp.zeros((H, o_pad), jnp.float32).at[:, :O].set(raw["wo"])
    bo = jnp.zeros((1, o_pad), jnp.float32).at[:, :O].set(raw["bo"])
    return dict(
        w1=raw["w1"].astype(jnp.bfloat16), b1=raw["b1"],
        w2=raw["w2"].astype(jnp.bfloat16), b2=raw["b2"],
        w3=raw["w3"].astype(jnp.bfloat16), b3=raw["b3"],
        wo=wo.astype(jnp.bfloat16), bo=bo,
    )


def init_params(key, input_dim, output_dim, hidden=256):
    """Deterministic synthetic init. Weights built as [out, in] (PyTorch layout)
    then transposed to [in, out] for the kernel."""
    ks = jax.random.split(key, 8)

    def linear(kw, kb, fan_in, fan_out):
        bound = 1.0 / jnp.sqrt(jnp.float32(fan_in))
        w = jax.random.uniform(kw, (fan_out, fan_in), jnp.float32, -bound, bound)
        b = jax.random.uniform(kb, (fan_out,), jnp.float32, -bound, bound)
        return w.T, b.reshape(1, fan_out)   # -> [in, out], [1, out]

    w1, b1 = linear(ks[0], ks[1], input_dim, hidden)
    w2, b2 = linear(ks[2], ks[3], hidden, hidden)
    w3, b3 = linear(ks[4], ks[5], hidden, hidden)
    wo, bo = linear(ks[6], ks[7], hidden, output_dim)
    return dict(w1=w1, b1=b1, w2=w2, b2=b2, w3=w3, b3=b3, wo=wo, bo=bo)


def mlp_reference_f32(x, p):
    leaky = lambda v: jnp.where(v > 0, v, 0.1 * v)
    h = leaky(x @ p["w1"] + p["b1"])
    h = leaky(h @ p["w2"] + p["b2"])
    h = leaky(h @ p["w3"] + p["b3"])
    return h @ p["wo"] + p["bo"], h


def mlp_reference_bf16(x, p):
    """Same bf16-matmul-input / f32-accumulate numerics as the kernel
    (before the final bf16 output rounding)."""
    leaky = lambda v: jnp.where(v > 0, v, 0.1 * v)
    bf = jnp.bfloat16
    dot = lambda a, w: jnp.dot(a.astype(bf), w.astype(bf),
                               preferred_element_type=jnp.float32)
    h = leaky(dot(x, p["w1"]) + p["b1"])
    h = leaky(dot(h, p["w2"]) + p["b2"])
    h = leaky(dot(h, p["w3"]) + p["b3"])
    return dot(h, p["wo"]) + p["bo"], h


if __name__ == "__main__":
    key = jax.random.PRNGKey(0)
    k_x, k_p = jax.random.split(key)

    # Small, module-consistent shapes; batch intentionally not a multiple of
    # the tile (exercises padding + multi-step grid paths).
    batch, input_dim, output_dim, hidden = 300, 32, 4, 256
    x = jax.random.normal(k_x, (batch, input_dim), jnp.float32)
    raw_params = init_params(k_p, input_dim, output_dim, hidden)
    params = prepare_params(raw_params, output_dim)   # one-time layout prep

    # Default (large) tile: single grid step at this small batch.
    y, h = jax.block_until_ready(mlp_forward(x, params, output_dim=output_dim))
    assert y.shape == (batch, output_dim) and h.shape == (batch, hidden)
    assert y.dtype == jnp.bfloat16 and h.dtype == jnp.bfloat16

    # Small tile: exercises a multi-step "parallel" grid + ragged-tail padding.
    y2, h2 = jax.block_until_ready(
        mlp_forward(x, params, output_dim=output_dim, tm=64))

    y32, h32 = y.astype(jnp.float32), h.astype(jnp.float32)

    # Tight check against a reference with matching bf16/f32 matmul numerics
    # (extra slack covers the bf16 output rounding of y/h).
    y_b, h_b = mlp_reference_bf16(x, raw_params)
    assert jnp.allclose(y32, y_b, atol=3e-2, rtol=3e-2)
    assert jnp.allclose(h32, h_b, atol=3e-2, rtol=3e-2)
    assert jnp.allclose(y2.astype(jnp.float32), y_b, atol=3e-2, rtol=3e-2)
    assert jnp.allclose(h2.astype(jnp.float32), h_b, atol=3e-2, rtol=3e-2)

    # Loose check against the pure-f32 reference (bf16 error budget).
    y_f, h_f = mlp_reference_f32(x, raw_params)
    assert jnp.allclose(y32, y_f, atol=7e-2, rtol=7e-2)
    assert jnp.allclose(h32, h_f, atol=7e-2, rtol=7e-2)

    print("KERNEL_OK")
</pallas_src>

<mosaic_0001>
module attributes {stable_mosaic.version = 11 : i64} {
  func.func @mlp_kernel(%arg0: i32, %arg1: memref<304x32xf32, #tpu.memory_space<vmem>>, %arg2: memref<32x256xbf16, #tpu.memory_space<vmem>>, %arg3: memref<1x256xf32, #tpu.memory_space<vmem>>, %arg4: memref<256x256xbf16, #tpu.memory_space<vmem>>, %arg5: memref<1x256xf32, #tpu.memory_space<vmem>>, %arg6: memref<256x256xbf16, #tpu.memory_space<vmem>>, %arg7: memref<1x256xf32, #tpu.memory_space<vmem>>, %arg8: memref<256x128xbf16, #tpu.memory_space<vmem>>, %arg9: memref<1x128xf32, #tpu.memory_space<vmem>>, %arg10: memref<304x128xbf16, #tpu.memory_space<vmem>>, %arg11: memref<304x256xbf16, #tpu.memory_space<vmem>>) attributes {dimension_semantics = [#tpu.dimension_semantics<parallel>], iteration_bounds = array<i64: 1>, scalar_prefetch = 0 : i64, scratch_operands = 0 : i64, tpu.core_type = #tpu.core_type<tc>, window_params = [{transform_indices = @transform_0, window_bounds = array<i64: 304, 32>}, {pipeline_mode = #tpu.pipeline_mode<synchronous>, transform_indices = @transform_1, window_bounds = array<i64: 32, 256>}, {pipeline_mode = #tpu.pipeline_mode<synchronous>, transform_indices = @transform_2, window_bounds = array<i64: 1, 256>}, {pipeline_mode = #tpu.pipeline_mode<synchronous>, transform_indices = @transform_3, window_bounds = array<i64: 256, 256>}, {pipeline_mode = #tpu.pipeline_mode<synchronous>, transform_indices = @transform_4, window_bounds = array<i64: 1, 256>}, {pipeline_mode = #tpu.pipeline_mode<synchronous>, transform_indices = @transform_5, window_bounds = array<i64: 256, 256>}, {pipeline_mode = #tpu.pipeline_mode<synchronous>, transform_indices = @transform_6, window_bounds = array<i64: 1, 256>}, {pipeline_mode = #tpu.pipeline_mode<synchronous>, transform_indices = @transform_7, window_bounds = array<i64: 256, 128>}, {pipeline_mode = #tpu.pipeline_mode<synchronous>, transform_indices = @transform_8, window_bounds = array<i64: 1, 128>}, {transform_indices = @transform_9, window_bounds = array<i64: 304, 128>}, {transform_indices = @transform_10, window_bounds = array<i64: 304, 256>}]} {
    %c0 = arith.constant 0 : index
    %c0_0 = arith.constant 0 : index
    %0 = vector.load %arg1[%c0, %c0_0] : memref<304x32xf32, #tpu.memory_space<vmem>>, vector<304x32xf32>
    %1 = arith.truncf %0 : vector<304x32xf32> to vector<304x32xbf16>
    %c0_1 = arith.constant 0 : index
    %c0_2 = arith.constant 0 : index
    %2 = vector.load %arg2[%c0_1, %c0_2] : memref<32x256xbf16, #tpu.memory_space<vmem>>, vector<32x256xbf16>
    %cst = arith.constant dense<0.000000e+00> : vector<304x256xf32>
    %3 = tpu.matmul %1, %2, %cst {dimension_numbers = #tpu.dot_dimension_numbers<[1], [0], [0], [1], [0, 0, 1, 1], [], []>} : vector<304x32xbf16>, vector<32x256xbf16>, vector<304x256xf32> -> vector<304x256xf32>
    %c0_3 = arith.constant 0 : index
    %c0_4 = arith.constant 0 : index
    %4 = vector.load %arg3[%c0_3, %c0_4] : memref<1x256xf32, #tpu.memory_space<vmem>>, vector<1x256xf32>
    %5 = vector.broadcast %4 : vector<1x256xf32> to vector<304x256xf32>
    %6 = arith.addf %3, %5 : vector<304x256xf32>
    %cst_5 = arith.constant 0.000000e+00 : f32
    %7 = vector.broadcast %cst_5 : f32 to vector<304x256xf32>
    %8 = arith.cmpf ogt, %6, %7 : vector<304x256xf32>
    %cst_6 = arith.constant 1.000000e-01 : f32
    %9 = vector.broadcast %cst_6 : f32 to vector<304x256xf32>
    %10 = arith.mulf %9, %6 : vector<304x256xf32>
    %11 = arith.select %8, %6, %10 : vector<304x256xi1>, vector<304x256xf32>
    %12 = arith.truncf %11 : vector<304x256xf32> to vector<304x256xbf16>
    %c0_7 = arith.constant 0 : index
    %c0_8 = arith.constant 0 : index
    %13 = vector.load %arg4[%c0_7, %c0_8] : memref<256x256xbf16, #tpu.memory_space<vmem>>, vector<256x256xbf16>
    %cst_9 = arith.constant dense<0.000000e+00> : vector<304x256xf32>
    %14 = tpu.matmul %12, %13, %cst_9 {dimension_numbers = #tpu.dot_dimension_numbers<[1], [0], [0], [1], [0, 0, 1, 1], [], []>} : vector<304x256xbf16>, vector<256x256xbf16>, vector<304x256xf32> -> vector<304x256xf32>
    %c0_10 = arith.constant 0 : index
    %c0_11 = arith.constant 0 : index
    %15 = vector.load %arg5[%c0_10, %c0_11] : memref<1x256xf32, #tpu.memory_space<vmem>>, vector<1x256xf32>
    %16 = vector.broadcast %15 : vector<1x256xf32> to vector<304x256xf32>
    %17 = arith.addf %14, %16 : vector<304x256xf32>
    %cst_12 = arith.constant 0.000000e+00 : f32
    %18 = vector.broadcast %cst_12 : f32 to vector<304x256xf32>
    %19 = arith.cmpf ogt, %17, %18 : vector<304x256xf32>
    %cst_13 = arith.constant 1.000000e-01 : f32
    %20 = vector.broadcast %cst_13 : f32 to vector<304x256xf32>
    %21 = arith.mulf %20, %17 : vector<304x256xf32>
    %22 = arith.select %19, %17, %21 : vector<304x256xi1>, vector<304x256xf32>
    %23 = arith.truncf %22 : vector<304x256xf32> to vector<304x256xbf16>
    %c0_14 = arith.constant 0 : index
    %c0_15 = arith.constant 0 : index
    %24 = vector.load %arg6[%c0_14, %c0_15] : memref<256x256xbf16, #tpu.memory_space<vmem>>, vector<256x256xbf16>
    %cst_16 = arith.constant dense<0.000000e+00> : vector<304x256xf32>
    %25 = tpu.matmul %23, %24, %cst_16 {dimension_numbers = #tpu.dot_dimension_numbers<[1], [0], [0], [1], [0, 0, 1, 1], [], []>} : vector<304x256xbf16>, vector<256x256xbf16>, vector<304x256xf32> -> vector<304x256xf32>
    %c0_17 = arith.constant 0 : index
    %c0_18 = arith.constant 0 : index
    %26 = vector.load %arg7[%c0_17, %c0_18] : memref<1x256xf32, #tpu.memory_space<vmem>>, vector<1x256xf32>
    %27 = vector.broadcast %26 : vector<1x256xf32> to vector<304x256xf32>
    %28 = arith.addf %25, %27 : vector<304x256xf32>
    %cst_19 = arith.constant 0.000000e+00 : f32
    %29 = vector.broadcast %cst_19 : f32 to vector<304x256xf32>
    %30 = arith.cmpf ogt, %28, %29 : vector<304x256xf32>
    %cst_20 = arith.constant 1.000000e-01 : f32
    %31 = vector.broadcast %cst_20 : f32 to vector<304x256xf32>
    %32 = arith.mulf %31, %28 : vector<304x256xf32>
    %33 = arith.select %30, %28, %32 : vector<304x256xi1>, vector<304x256xf32>
    %34 = arith.truncf %33 : vector<304x256xf32> to vector<304x256xbf16>
    %c0_21 = arith.constant 0 : index
    %c0_22 = arith.constant 0 : index
    %35 = vector.load %arg11[%c0_21, %c0_22] : memref<304x256xbf16, #tpu.memory_space<vmem>>, vector<304x256xbf16>
    tpu.vector_store %arg11[%c0_21, %c0_22], %34 {strides = array<i32>} : memref<304x256xbf16, #tpu.memory_space<vmem>>, vector<304x256xbf16>,
    %36 = arith.truncf %33 : vector<304x256xf32> to vector<304x256xbf16>
    %c0_23 = arith.constant 0 : index
    %c0_24 = arith.constant 0 : index
    %37 = vector.load %arg8[%c0_23, %c0_24] : memref<256x128xbf16, #tpu.memory_space<vmem>>, vector<256x128xbf16>
    %cst_25 = arith.constant dense<0.000000e+00> : vector<304x128xf32>
    %38 = tpu.matmul %36, %37, %cst_25 {dimension_numbers = #tpu.dot_dimension_numbers<[1], [0], [0], [1], [0, 0, 1, 1], [], []>} : vector<304x256xbf16>, vector<256x128xbf16>, vector<304x128xf32> -> vector<304x128xf32>
    %c0_26 = arith.constant 0 : index
    %c0_27 = arith.constant 0 : index
    %39 = vector.load %arg9[%c0_26, %c0_27] : memref<1x128xf32, #tpu.memory_space<vmem>>, vector<1x128xf32>
    %40 = vector.broadcast %39 : vector<1x128xf32> to vector<304x128xf32>
    %41 = arith.addf %38, %40 : vector<304x128xf32>
    %42 = arith.truncf %41 : vector<304x128xf32> to vector<304x128xbf16>
    %c0_28 = arith.constant 0 : index
    %c0_29 = arith.constant 0 : index
    %43 = vector.load %arg10[%c0_28, %c0_29] : memref<304x128xbf16, #tpu.memory_space<vmem>>, vector<304x128xbf16>
    tpu.vector_store %arg10[%c0_28, %c0_29], %42 {strides = array<i32>} : memref<304x128xbf16, #tpu.memory_space<vmem>>, vector<304x128xbf16>,
    return
  }
  func.func @transform_0(%arg0: i32) -> (i32, i32) {
    %c0_i32 = arith.constant 0 : i32
    %c0_i32_0 = arith.constant 0 : i32
    return %arg0, %c0_i32 : i32, i32
  }
  func.func @transform_1(%arg0: i32) -> (i32, i32) {
    %c0_i32 = arith.constant 0 : i32
    %c0_i32_0 = arith.constant 0 : i32
    %c0_i32_1 = arith.constant 0 : i32
    return %c0_i32, %c0_i32_0 : i32, i32
  }
  func.func @transform_2(%arg0: i32) -> (i32, i32) {
    %c0_i32 = arith.constant 0 : i32
    %c0_i32_0 = arith.constant 0 : i32
    %c0_i32_1 = arith.constant 0 : i32
    return %c0_i32, %c0_i32_0 : i32, i32
  }
  func.func @transform_3(%arg0: i32) -> (i32, i32) {
    %c0_i32 = arith.constant 0 : i32
    %c0_i32_0 = arith.constant 0 : i32
    %c0_i32_1 = arith.constant 0 : i32
    return %c0_i32, %c0_i32_0 : i32, i32
  }
  func.func @transform_4(%arg0: i32) -> (i32, i32) {
    %c0_i32 = arith.constant 0 : i32
    %c0_i32_0 = arith.constant 0 : i32
    %c0_i32_1 = arith.constant 0 : i32
    return %c0_i32, %c0_i32_0 : i32, i32
  }
  func.func @transform_5(%arg0: i32) -> (i32, i32) {
    %c0_i32 = arith.constant 0 : i32
    %c0_i32_0 = arith.constant 0 : i32
    %c0_i32_1 = arith.constant 0 : i32
    return %c0_i32, %c0_i32_0 : i32, i32
  }
  func.func @transform_6(%arg0: i32) -> (i32, i32) {
    %c0_i32 = arith.constant 0 : i32
    %c0_i32_0 = arith.constant 0 : i32
    %c0_i32_1 = arith.constant 0 : i32
    return %c0_i32, %c0_i32_0 : i32, i32
  }
  func.func @transform_7(%arg0: i32) -> (i32, i32) {
    %c0_i32 = arith.constant 0 : i32
    %c0_i32_0 = arith.constant 0 : i32
    %c0_i32_1 = arith.constant 0 : i32
    return %c0_i32, %c0_i32_0 : i32, i32
  }
  func.func @transform_8(%arg0: i32) -> (i32, i32) {
    %c0_i32 = arith.constant 0 : i32
    %c0_i32_0 = arith.constant 0 : i32
    %c0_i32_1 = arith.constant 0 : i32
    return %c0_i32, %c0_i32_0 : i32, i32
  }
  func.func @transform_9(%arg0: i32) -> (i32, i32) {
    %c0_i32 = arith.constant 0 : i32
    %c0_i32_0 = arith.constant 0 : i32
    return %arg0, %c0_i32 : i32, i32
  }
  func.func @transform_10(%arg0: i32) -> (i32, i32) {
    %c0_i32 = arith.constant 0 : i32
    %c0_i32_0 = arith.constant 0 : i32
    return %arg0, %c0_i32 : i32, i32
  }
}

</mosaic_0001>

<llo_original>
// kernel: mlp_forward.1
$region0: #{mlp_forward.1}
  #allocation0 [shape = 'u32[]', space=smem, size = 0x4, offset = 0x4, fixed_abs, tag = 'smem constant byte address 0x4 - core index']
  #allocation1 [shape = 'u32[144,128]{1,0:T(1,128)}', space=vmem, size = 0x12000, scoped, tag = 'internal scratch']
  %s0 = inlined_call_operand.vmem [shape: f32[304,32], index: 0, kind: input, shape index: {}]
  %s1 = inlined_call_operand.vmem [shape: bf16[32,256], index: 1, kind: input, shape index: {}]
  %s2 = inlined_call_operand.vmem [shape: f32[1,256], index: 2, kind: input, shape index: {}]
  %s3 = inlined_call_operand.vmem [shape: bf16[256,256], index: 3, kind: input, shape index: {}]
  %s4 = inlined_call_operand.vmem [shape: f32[1,256], index: 4, kind: input, shape index: {}]
  %s5 = inlined_call_operand.vmem [shape: bf16[256,256], index: 5, kind: input, shape index: {}]
  %s6 = inlined_call_operand.vmem [shape: f32[1,256], index: 6, kind: input, shape index: {}]
  %s7 = inlined_call_operand.vmem [shape: bf16[256,128], index: 7, kind: input, shape index: {}]
  %s8 = inlined_call_operand.vmem [shape: f32[1,128], index: 8, kind: input, shape index: {}]
  %s9 = inlined_call_operand.vmem [shape: bf16[304,128], index: 9, kind: output, shape index: {0}]
  %s10 = inlined_call_operand.hbm [shape: bf16[304,256], index: 10, kind: output, shape index: {1}]
  %11 = xla_tuple %s9, %s10
  %s12 = sld [smem:[#allocation0]]
  $region54: #{mlp_forward.1} parent=0
    _
  %s14 = ssub.s32 1, %s12
  %s15 = scalar_select 0, %s14, %s12
  $region1: #{mlp_forward.1} parent=0
    #allocation2 [shape = 'u8[155648]{0}', space=vmem, size = 0x26000, scoped, tag = 'output window, operand 1, single buffered']
    #allocation3 [shape = 's32[1]{0}', space=sflag, size = 0x4, scoped, tag = 'scoped memory for mlp_forward.1']
    %16 = vsyncpa [#allocation3], 0
    // Predicated region
    $region2: #{mlp_forward.1} parent=1 // pred_check
      _
    $region3: #{mlp_forward.1} parent=1 // pred_check_branch
      %18 = sbr.rel (0) target = $region5
    $region4: #{mlp_forward.1} parent=1 // pred_region
      _
    $region5: #{mlp_forward.1} parent=1 // pred_fallthru
      _
    // Predicated region
    $region6: #{mlp_forward.1} parent=1 // pred_check
      _
    $region7: #{mlp_forward.1} parent=1 // pred_check_branch
      %20 = sbr.rel (0) target = $region9
    $region8: #{mlp_forward.1} parent=1 // pred_region
      _
    $region9: #{mlp_forward.1} parent=1 // pred_fallthru
      _
    // Predicated region
    $region10: #{mlp_forward.1} parent=1 // pred_check
      _
    $region11: #{mlp_forward.1} parent=1 // pred_check_branch
      %22 = sbr.rel (0) target = $region13
    $region12: #{mlp_forward.1} parent=1 // pred_region
      _
    $region13: #{mlp_forward.1} parent=1 // pred_fallthru
      _
    // Predicated region
    $region14: #{mlp_forward.1} parent=1 // pred_check
      _
    $region15: #{mlp_forward.1} parent=1 // pred_check_branch
      %24 = sbr.rel (0) target = $region17
    $region16: #{mlp_forward.1} parent=1 // pred_region
      _
    $region17: #{mlp_forward.1} parent=1 // pred_fallthru
      _
    // Predicated region
    $region18: #{mlp_forward.1} parent=1 // pred_check
      _
    $region19: #{mlp_forward.1} parent=1 // pred_check_branch
      %26 = sbr.rel (0) target = $region21
    $region20: #{mlp_forward.1} parent=1 // pred_region
      _
    $region21: #{mlp_forward.1} parent=1 // pred_fallthru
      _
    // Predicated region
    $region22: #{mlp_forward.1} parent=1 // pred_check
      _
    $region23: #{mlp_forward.1} parent=1 // pred_check_branch
      %28 = sbr.rel (0) target = $region25
    $region24: #{mlp_forward.1} parent=1 // pred_region
      _
    $region25: #{mlp_forward.1} parent=1 // pred_fallthru
      _
    // Predicated region
    $region26: #{mlp_forward.1} parent=1 // pred_check
      _
    $region27: #{mlp_forward.1} parent=1 // pred_check_branch
      %30 = sbr.rel (0) target = $region29
    $region28: #{mlp_forward.1} parent=1 // pred_region
      _
    $region29: #{mlp_forward.1} parent=1 // pred_fallthru
      _
    // Predicated region
    $region30: #{mlp_forward.1} parent=1 // pred_check
      _
    $region31: #{mlp_forward.1} parent=1 // pred_check_branch
      %32 = sbr.rel (0) target = $region33
    $region32: #{mlp_forward.1} parent=1 // pred_region
      _
    $region33: #{mlp_forward.1} parent=1 // pred_fallthru
      _
    // Predicated region
    $region34: #{mlp_forward.1} parent=1 // pred_check
      _
    $region35: #{mlp_forward.1} parent=1 // pred_check_branch
      %34 = sbr.rel (0) target = $region37
    $region36: #{mlp_forward.1} parent=1 // pred_region
      _
    $region37: #{mlp_forward.1} parent=1 // pred_fallthru
      _
    %v36 = vld [vmem:[%s0] sm:$0xff]
    %v37 = vld [vmem:[%s0 + $0x8] sm:$0xff]
    %v38 = vld [vmem:[%s0 + $0x10] sm:$0xff]
    %v39 = vld [vmem:[%s0 + $0x18] sm:$0xff]
    %v40 = vld [vmem:[%s0 + $0x20] sm:$0xff]
    %v41 = vld [vmem:[%s0 + $0x28] sm:$0xff]
    %v42 = vld [vmem:[%s0 + $0x30] sm:$0xff]
    %v43 = vld [vmem:[%s0 + $0x38] sm:$0xff]
    %v44 = vld [vmem:[%s0 + $0x40] sm:$0xff]
    %v45 = vld [vmem:[%s0 + $0x48] sm:$0xff]
    %v46 = vld [vmem:[%s0 + $0x50] sm:$0xff]
    %v47 = vld [vmem:[%s0 + $0x58] sm:$0xff]
    %v48 = vld [vmem:[%s0 + $0x60] sm:$0xff]
    %v49 = vld [vmem:[%s0 + $0x68] sm:$0xff]
    %v50 = vld [vmem:[%s0 + $0x70] sm:$0xff]
    %v51 = vld [vmem:[%s0 + $0x78] sm:$0xff]
    %v52 = vld [vmem:[%s0 + $0x80] sm:$0xff]
    %v53 = vld [vmem:[%s0 + $0x88] sm:$0xff]
    %v54 = vld [vmem:[%s0 + $0x90] sm:$0xff]
    %v55 = vld [vmem:[%s0 + $0x98] sm:$0xff]
    %v56 = vld [vmem:[%s0 + $0xa0] sm:$0xff]
    %v57 = vld [vmem:[%s0 + $0xa8] sm:$0xff]
    %v58 = vld [vmem:[%s0 + $0xb0] sm:$0xff]
    %v59 = vld [vmem:[%s0 + $0xb8] sm:$0xff]
    %v60 = vld [vmem:[%s0 + $0xc0] sm:$0xff]
    %v61 = vld [vmem:[%s0 + $0xc8] sm:$0xff]
    %v62 = vld [vmem:[%s0 + $0xd0] sm:$0xff]
    %v63 = vld [vmem:[%s0 + $0xd8] sm:$0xff]
    %v64 = vld [vmem:[%s0 + $0xe0] sm:$0xff]
    %v65 = vld [vmem:[%s0 + $0xe8] sm:$0xff]
    %v66 = vld [vmem:[%s0 + $0xf0] sm:$0xff]
    %v67 = vld [vmem:[%s0 + $0xf8] sm:$0xff]
    %v68 = vld [vmem:[%s0 + $0x100] sm:$0xff]
    %v69 = vld [vmem:[%s0 + $0x108] sm:$0xff]
    %v70 = vld [vmem:[%s0 + $0x110] sm:$0xff]
    %v71 = vld [vmem:[%s0 + $0x118] sm:$0xff]
    %v72 = vld [vmem:[%s0 + $0x120] sm:$0xff]
    %v73 = vld [vmem:[%s0 + $0x128] sm:$0xff]
    %v74 = vpack.c.bf16 %v37, %v36
    %v75 = vpack.c.bf16 %v39, %v38
    %v76 = vpack.c.bf16 %v41, %v40
    %v77 = vpack.c.bf16 %v43, %v42
    %v78 = vpack.c.bf16 %v45, %v44
    %v79 = vpack.c.bf16 %v47, %v46
    %v80 = vpack.c.bf16 %v49, %v48
    %v81 = vpack.c.bf16 %v51, %v50
    %v82 = vpack.c.bf16 %v53, %v52
    %v83 = vpack.c.bf16 %v55, %v54
    %v84 = vpack.c.bf16 %v57, %v56
    %v85 = vpack.c.bf16 %v59, %v58
    %v86 = vpack.c.bf16 %v61, %v60
    %v87 = vpack.c.bf16 %v63, %v62
    %v88 = vpack.c.bf16 %v65, %v64
    %v89 = vpack.c.bf16 %v67, %v66
    %v90 = vpack.c.bf16 %v69, %v68
    %v91 = vpack.c.bf16 %v71, %v70
    %v92 = vpack.c.bf16 %v73, %v72
    %v93 = vld [vmem:[%s1] sm:$0xff]
    %v94 = vld [vmem:[%s1 + $0x8] sm:$0xff]
    %v95 = vld [vmem:[%s1 + $0x10] sm:$0xff]
    %v96 = vld [vmem:[%s1 + $0x18] sm:$0xff]
    %v97 = vld [vmem:[%s2] sm:$0x3]
    %v99 = vlaneseq
    %v100 = vshrl.u32 %v99, 7
    %v101 = vsub.s32 0, %v100
    %v102 = vrot.slane %v97, %v101
    %v103 = vlaneseq
    %v104 = vshrl.u32 %v103, 7
    %v105 = vsub.s32 1, %v104
    %v106 = vrot.slane %v97, %v105
    %v113 = vunpack.c.l.b16 %v93
    %v114 = vunpack.c.h.b16 %v93
    %v115 = vunpack.c.l.b16 %v94
    %v116 = vunpack.c.h.b16 %v94
    %v117 = vunpack.c.l.b16 %v95
    %v118 = vunpack.c.h.b16 %v95
    %v119 = vunpack.c.l.b16 %v96
    %v120 = vunpack.c.h.b16 %v96
    %v121 = vpack.c.b16 %v115, %v113
    %v122 = vpack.c.b16 %v116, %v114
    %v123 = vpack.c.b16 %v119, %v117
    %v124 = vpack.c.b16 %v120, %v118
    %vm129 = vcmask 261120
    %v131 = vsel %vm129, %v74, 0
    %v134 = vsel %vm129, %v75, 0
    %v137 = vsel %vm129, %v76, 0
    %v140 = vsel %vm129, %v77, 0
    %v143 = vsel %vm129, %v78, 0
    %v146 = vsel %vm129, %v79, 0
    %v149 = vsel %vm129, %v80, 0
    %v152 = vsel %vm129, %v81, 0
    %v155 = vsel %vm129, %v82, 0
    %v158 = vsel %vm129, %v83, 0
    %v161 = vsel %vm129, %v84, 0
    %v164 = vsel %vm129, %v85, 0
    %v167 = vsel %vm129, %v86, 0
    %v170 = vsel %vm129, %v87, 0
    %v173 = vsel %vm129, %v88, 0
    %v176 = vsel %vm129, %v89, 0
    %v179 = vsel %vm129, %v90, 0
    %v182 = vsel %vm129, %v91, 0
    %v185 = vsel %vm129, %v92, 0
    %187 = vmatprep.subr.bf16.mxu0 %v122
    %188 = vmatpush1.bf16.msra.mxu0 %v121
    %189 = vmatprep.subr.bf16.mxu0 %v124
    %190 = vmatpush1.bf16.msra.mxu0 %v123
    %191 = vmatprep.subr.bf16.mxu0 0
    %192 = vmatpush1.bf16.msra.mxu0 0
    %193 = vmatprep.subr.bf16.mxu0 0
    %194 = vmatpush1.bf16.msra.mxu0 0
    %195 = vmatprep.subr.bf16.mxu0 0
    %196 = vmatpush1.bf16.msra.mxu0 0
    %197 = vmatprep.subr.bf16.mxu0 0
    %198 = vmatpush1.bf16.msra.mxu0 0
    %199 = vmatprep.subr.bf16.mxu0 0
    %200 = vmatpush1.bf16.msra.mxu0 0
    %201 = vmatprep.subr.bf16.mxu0 0
    %202 = vmatpush1.bf16.msra.mxu0 0
    %203 = vmatprep.subr.bf16.mxu0 0
    %204 = vmatpush1.bf16.msra.mxu0 0
    %205 = vmatprep.subr.bf16.mxu0 0
    %206 = vmatpush1.bf16.msra.mxu0 0
    %207 = vmatprep.subr.bf16.mxu0 0
    %208 = vmatpush1.bf16.msra.mxu0 0
    %209 = vmatprep.subr.bf16.mxu0 0
    %210 = vmatpush1.bf16.msra.mxu0 0
    %211 = vmatprep.subr.bf16.mxu0 0
    %212 = vmatpush1.bf16.msra.mxu0 0
    %213 = vmatprep.subr.bf16.mxu0 0
    %214 = vmatpush1.bf16.msra.mxu0 0
    %215 = vmatprep.subr.bf16.mxu0 0
    %216 = vmatpush1.bf16.msra.mxu0 0
    %217 = vmatprep.subr.bf16.mxu0 0
    %218 = vmatpush1.bf16.msra.mxu0 0
    %219 = vmatprep.mubr.bf16.mxu0 0
    %220 = vmatmul.mubr.bf16.gmra.mrb[0].mxu0 %v131
    %v221 = vpop.f32.mrb[0].mxu0
    %v222 = vadd.f32 %v102, %v221
    %v223 = vpop.f32.mrb[0].mxu0
    %v224 = vadd.f32 %v106, %v223
    %v225 = vpop.f32.mrb[0].mxu0
    %v226 = vadd.f32 %v102, %v225
    %v227 = vpop.f32.mrb[0].mxu0
    %v228 = vadd.f32 %v106, %v227
    %229 = vmatprep.mubr.bf16.mxu0 0
    %230 = vmatmul.mubr.bf16.gmra.mrb[0].mxu0 %v134
    %v231 = vpop.f32.mrb[0].mxu0
    %v232 = vadd.f32 %v102, %v231
    %v233 = vpop.f32.mrb[0].mxu0
    %v234 = vadd.f32 %v106, %v233
    %v235 = vpop.f32.mrb[0].mxu0
    %v236 = vadd.f32 %v102, %v235
    %v237 = vpop.f32.mrb[0].mxu0
    %v238 = vadd.f32 %v106, %v237
    %239 = vmatprep.mubr.bf16.mxu0 0
    %240 = vmatmul.mubr.bf16.gmra.mrb[0].mxu0 %v137
    %v241 = vpop.f32.mrb[0].mxu0
    %v242 = vadd.f32 %v102, %v241
    %v243 = vpop.f32.mrb[0].mxu0
    %v244 = vadd.f32 %v106, %v243
    %v245 = vpop.f32.mrb[0].mxu0
    %v246 = vadd.f32 %v102, %v245
    %v247 = vpop.f32.mrb[0].mxu0
    %v248 = vadd.f32 %v106, %v247
    %249 = vmatprep.mubr.bf16.mxu0 0
    %250 = vmatmul.mubr.bf16.gmra.mrb[0].mxu0 %v140
    %v251 = vpop.f32.mrb[0].mxu0
    %v252 = vadd.f32 %v102, %v251
    %v253 = vpop.f32.mrb[0].mxu0
    %v254 = vadd.f32 %v106, %v253
    %v255 = vpop.f32.mrb[0].mxu0
    %v256 = vadd.f32 %v102, %v255
    %v257 = vpop.f32.mrb[0].mxu0
    %v258 = vadd.f32 %v106, %v257
    %259 = vmatprep.mubr.bf16.mxu0 0
    %260 = vmatmul.mubr.bf16.gmra.mrb[0].mxu0 %v143
    %v261 = vpop.f32.mrb[0].mxu0
    %v262 = vadd.f32 %v102, %v261
    %v263 = vpop.f32.mrb[0].mxu0
    %v264 = vadd.f32 %v106, %v263
    %v265 = vpop.f32.mrb[0].mxu0
    %v266 = vadd.f32 %v102, %v265
    %v267 = vpop.f32.mrb[0].mxu0
    %v268 = vadd.f32 %v106, %v267
    %269 = vmatprep.mubr.bf16.mxu0 0
    %270 = vmatmul.mubr.bf16.gmra.mrb[0].mxu0 %v146
    %v271 = vpop.f32.mrb[0].mxu0
    %v272 = vadd.f32 %v102, %v271
    %v273 = vpop.f32.mrb[0].mxu0
    %v274 = vadd.f32 %v106, %v273
    %v275 = vpop.f32.mrb[0].mxu0
    %v276 = vadd.f32 %v102, %v275
    %v277 = vpop.f32.mrb[0].mxu0
    %v278 = vadd.f32 %v106, %v277
    %279 = vmatprep.mubr.bf16.mxu0 0
    %280 = vmatmul.mubr.bf16.gmra.mrb[0].mxu0 %v149
    %v281 = vpop.f32.mrb[0].mxu0
    %v282 = vadd.f32 %v102, %v281
    %v283 = vpop.f32.mrb[0].mxu0
    %v284 = vadd.f32 %v106, %v283
    %v285 = vpop.f32.mrb[0].mxu0
    %v286 = vadd.f32 %v102, %v285
    %v287 = vpop.f32.mrb[0].mxu0
    %v288 = vadd.f32 %v106, %v287
    %289 = vmatprep.mubr.bf16.mxu0 0
    %290 = vmatmul.mubr.bf16.gmra.mrb[0].mxu0 %v152
    %v291 = vpop.f32.mrb[0].mxu0
    %v292 = vadd.f32 %v102, %v291
    %v293 = vpop.f32.mrb[0].mxu0
    %v294 = vadd.f32 %v106, %v293
    %v295 = vpop.f32.mrb[0].mxu0
    %v296 = vadd.f32 %v102, %v295
    %v297 = vpop.f32.mrb[0].mxu0
    %v298 = vadd.f32 %v106, %v297
    %299 = vmatprep.mubr.bf16.mxu0 0
    %300 = vmatmul.mubr.bf16.gmra.mrb[0].mxu0 %v155
    %v301 = vpop.f32.mrb[0].mxu0
    %v302 = vadd.f32 %v102, %v301
    %v303 = vpop.f32.mrb[0].mxu0
    %v304 = vadd.f32 %v106, %v303
    %v305 = vpop.f32.mrb[0].mxu0
    %v306 = vadd.f32 %v102, %v305
    %v307 = vpop.f32.mrb[0].mxu0
    %v308 = vadd.f32 %v106, %v307
    %309 = vmatprep.mubr.bf16.mxu0 0
    %310 = vmatmul.mubr.bf16.gmra.mrb[0].mxu0 %v158
    %v311 = vpop.f32.mrb[0].mxu0
    %v312 = vadd.f32 %v102, %v311
    %v313 = vpop.f32.mrb[0].mxu0
    %v314 = vadd.f32 %v106, %v313
    %v315 = vpop.f32.mrb[0].mxu0
    %v316 = vadd.f32 %v102, %v315
    %v317 = vpop.f32.mrb[0].mxu0
    %v318 = vadd.f32 %v106, %v317
    %319 = vmatprep.mubr.bf16.mxu0 0
    %320 = vmatmul.mubr.bf16.gmra.mrb[0].mxu0 %v161
    %v321 = vpop.f32.mrb[0].mxu0
    %v322 = vadd.f32 %v102, %v321
    %v323 = vpop.f32.mrb[0].mxu0
    %v324 = vadd.f32 %v106, %v323
    %v325 = vpop.f32.mrb[0].mxu0
    %v326 = vadd.f32 %v102, %v325
    %v327 = vpop.f32.mrb[0].mxu0
    %v328 = vadd.f32 %v106, %v327
    %329 = vmatprep.mubr.bf16.mxu0 0
    %330 = vmatmul.mubr.bf16.gmra.mrb[0].mxu0 %v164
    %v331 = vpop.f32.mrb[0].mxu0
    %v332 = vadd.f32 %v102, %v331
    %v333 = vpop.f32.mrb[0].mxu0
    %v334 = vadd.f32 %v106, %v333
    %v335 = vpop.f32.mrb[0].mxu0
    %v336 = vadd.f32 %v102, %v335
    %v337 = vpop.f32.mrb[0].mxu0
    %v338 = vadd.f32 %v106, %v337
    %339 = vmatprep.mubr.bf16.mxu0 0
    %340 = vmatmul.mubr.bf16.gmra.mrb[0].mxu0 %v167
    %v341 = vpop.f32.mrb[0].mxu0
    %v342 = vadd.f32 %v102, %v341
    %v343 = vpop.f32.mrb[0].mxu0
    %v344 = vadd.f32 %v106, %v343
    %v345 = vpop.f32.mrb[0].mxu0
    %v346 = vadd.f32 %v102, %v345
    %v347 = vpop.f32.mrb[0].mxu0
    %v348 = vadd.f32 %v106, %v347
    %349 = vmatprep.mubr.bf16.mxu0 0
    %350 = vmatmul.mubr.bf16.gmra.mrb[0].mxu0 %v170
    %v351 = vpop.f32.mrb[0].mxu0
    %v352 = vadd.f32 %v102, %v351
    %v353 = vpop.f32.mrb[0].mxu0
    %v354 = vadd.f32 %v106, %v353
    %v355 = vpop.f32.mrb[0].mxu0
    %v356 = vadd.f32 %v102, %v355
    %v357 = vpop.f32.mrb[0].mxu0
    %v358 = vadd.f32 %v106, %v357
    %359 = vmatprep.mubr.bf16.mxu0 0
    %360 = vmatmul.mubr.bf16.gmra.mrb[0].mxu0 %v173
    %v361 = vpop.f32.mrb[0].mxu0
    %v362 = vadd.f32 %v102, %v361
    %v363 = vpop.f32.mrb[0].mxu0
    %v364 = vadd.f32 %v106, %v363
    %v365 = vpop.f32.mrb[0].mxu0
    %v366 = vadd.f32 %v102, %v365
    %v367 = vpop.f32.mrb[0].mxu0
    %v368 = vadd.f32 %v106, %v367
    %369 = vmatprep.mubr.bf16.mxu0 0
    %370 = vmatmul.mubr.bf16.gmra.mrb[0].mxu0 %v176
    %v371 = vpop.f32.mrb[0].mxu0
    %v372 = vadd.f32 %v102, %v371
    %v373 = vpop.f32.mrb[0].mxu0
    %v374 = vadd.f32 %v106, %v373
    %v375 = vpop.f32.mrb[0].mxu0
    %v376 = vadd.f32 %v102, %v375
    %v377 = vpop.f32.mrb[0].mxu0
    %v378 = vadd.f32 %v106, %v377
    %379 = vmatprep.mubr.bf16.mxu0 0
    %380 = vmatmul.mubr.bf16.gmra.mrb[0].mxu0 %v179
    %v381 = vpop.f32.mrb[0].mxu0
    %v382 = vadd.f32 %v102, %v381
    %v383 = vpop.f32.mrb[0].mxu0
    %v384 = vadd.f32 %v106, %v383
    %v385 = vpop.f32.mrb[0].mxu0
    %v386 = vadd.f32 %v102, %v385
    %v387 = vpop.f32.mrb[0].mxu0
    %v388 = vadd.f32 %v106, %v387
    %389 = vmatprep.mubr.bf16.mxu0 0
    %390 = vmatmul.mubr.bf16.gmra.mrb[0].mxu0 %v182
    %v391 = vpop.f32.mrb[0].mxu0
    %v392 = vadd.f32 %v102, %v391
    %v393 = vpop.f32.mrb[0].mxu0
    %v394 = vadd.f32 %v106, %v393
    %v395 = vpop.f32.mrb[0].mxu0
    %v396 = vadd.f32 %v102, %v395
    %v397 = vpop.f32.mrb[0].mxu0
    %v398 = vadd.f32 %v106, %v397
    %399 = vmatprep.mubr.bf16.mxu0 0
    %400 = vmatmul.mubr.bf16.gmra.mrb[0].mxu0 %v185
    %v401 = vpop.f32.mrb[0].mxu0
    %v402 = vadd.f32 %v102, %v401
    %v403 = vpop.f32.mrb[0].mxu0
    %v404 = vadd.f32 %v106, %v403
    %v405 = vpop.f32.mrb[0].mxu0
    %v406 = vadd.f32 %v102, %v405
    %v407 = vpop.f32.mrb[0].mxu0
    %v408 = vadd.f32 %v106, %v407
    %409 = vdwg.mxu0
    %vm410 = vcmp.gt.f32.partialorder %v222, 0.0
    %vm411 = vcmp.gt.f32.partialorder %v224, 0.0
    %vm412 = vcmp.gt.f32.partialorder %v226, 0.0
    %vm413 = vcmp.gt.f32.partialorder %v228, 0.0
    %vm414 = vcmp.gt.f32.partialorder %v232, 0.0
    %vm415 = vcmp.gt.f32.partialorder %v234, 0.0
    %vm416 = vcmp.gt.f32.partialorder %v236, 0.0
    %vm417 = vcmp.gt.f32.partialorder %v238, 0.0
    %vm418 = vcmp.gt.f32.partialorder %v242, 0.0
    %vm419 = vcmp.gt.f32.partialorder %v244, 0.0
    %vm420 = vcmp.gt.f32.partialorder %v246, 0.0
    %vm421 = vcmp.gt.f32.partialorder %v248, 0.0
    %vm422 = vcmp.gt.f32.partialorder %v252, 0.0
    %vm423 = vcmp.gt.f32.partialorder %v254, 0.0
    %vm424 = vcmp.gt.f32.partialorder %v256, 0.0
    %vm425 = vcmp.gt.f32.partialorder %v258, 0.0
    %vm426 = vcmp.gt.f32.partialorder %v262, 0.0
    %vm427 = vcmp.gt.f32.partialorder %v264, 0.0
    %vm428 = vcmp.gt.f32.partialorder %v266, 0.0
    %vm429 = vcmp.gt.f32.partialorder %v268, 0.0
    %vm430 = vcmp.gt.f32.partialorder %v272, 0.0
    %vm431 = vcmp.gt.f32.partialorder %v274, 0.0
    %vm432 = vcmp.gt.f32.partialorder %v276, 0.0
    %vm433 = vcmp.gt.f32.partialorder %v278, 0.0
    %vm434 = vcmp.gt.f32.partialorder %v282, 0.0
    %vm435 = vcmp.gt.f32.partialorder %v284, 0.0
    %vm436 = vcmp.gt.f32.partialorder %v286, 0.0
    %vm437 = vcmp.gt.f32.partialorder %v288, 0.0
    %vm438 = vcmp.gt.f32.partialorder %v292, 0.0
    %vm439 = vcmp.gt.f32.partialorder %v294, 0.0
    %vm440 = vcmp.gt.f32.partialorder %v296, 0.0
    %vm441 = vcmp.gt.f32.partialorder %v298, 0.0
    %vm442 = vcmp.gt.f32.partialorder %v302, 0.0
    %vm443 = vcmp.gt.f32.partialorder %v304, 0.0
    %vm444 = vcmp.gt.f32.partialorder %v306, 0.0
    %vm445 = vcmp.gt.f32.partialorder %v308, 0.0
    %vm446 = vcmp.gt.f32.partialorder %v312, 0.0
    %vm447 = vcmp.gt.f32.partialorder %v314, 0.0
    %vm448 = vcmp.gt.f32.partialorder %v316, 0.0
    %vm449 = vcmp.gt.f32.partialorder %v318, 0.0
    %vm450 = vcmp.gt.f32.partialorder %v322, 0.0
    %vm451 = vcmp.gt.f32.partialorder %v324, 0.0
    %vm452 = vcmp.gt.f32.partialorder %v326, 0.0
    %vm453 = vcmp.gt.f32.partialorder %v328, 0.0
    %vm454 = vcmp.gt.f32.partialorder %v332, 0.0
    %vm455 = vcmp.gt.f32.partialorder %v334, 0.0
    %vm456 = vcmp.gt.f32.partialorder %v336, 0.0
    %vm457 = vcmp.gt.f32.partialorder %v338, 0.0
    %vm458 = vcmp.gt.f32.partialorder %v342, 0.0
    %vm459 = vcmp.gt.f32.partialorder %v344, 0.0
    %vm460 = vcmp.gt.f32.partialorder %v346, 0.0
    %vm461 = vcmp.gt.f32.partialorder %v348, 0.0
    %vm462 = vcmp.gt.f32.partialorder %v352, 0.0
    %vm463 = vcmp.gt.f32.partialorder %v354, 0.0
    %vm464 = vcmp.gt.f32.partialorder %v356, 0.0
    %vm465 = vcmp.gt.f32.partialorder %v358, 0.0
    %vm466 = vcmp.gt.f32.partialorder %v362, 0.0
    %vm467 = vcmp.gt.f32.partialorder %v364, 0.0
    %vm468 = vcmp.gt.f32.partialorder %v366, 0.0
    %vm469 = vcmp.gt.f32.partialorder %v368, 0.0
    %vm470 = vcmp.gt.f32.partialorder %v372, 0.0
    %vm471 = vcmp.gt.f32.partialorder %v374, 0.0
    %vm472 = vcmp.gt.f32.partialorder %v376, 0.0
    %vm473 = vcmp.gt.f32.partialorder %v378, 0.0
    %vm474 = vcmp.gt.f32.partialorder %v382, 0.0
    %vm475 = vcmp.gt.f32.partialorder %v384, 0.0
    %vm476 = vcmp.gt.f32.partialorder %v386, 0.0
    %vm477 = vcmp.gt.f32.partialorder %v388, 0.0
    %vm478 = vcmp.gt.f32.partialorder %v392, 0.0
    %vm479 = vcmp.gt.f32.partialorder %v394, 0.0
    %vm480 = vcmp.gt.f32.partialorder %v396, 0.0
    %vm481 = vcmp.gt.f32.partialorder %v398, 0.0
    %vm482 = vcmp.gt.f32.partialorder %v402, 0.0
    %vm483 = vcmp.gt.f32.partialorder %v404, 0.0
    %vm484 = vcmp.gt.f32.partialorder %v406, 0.0
    %vm485 = vcmp.gt.f32.partialorder %v408, 0.0
    %v486 = vmul.f32 %v222, 0.1
    %v487 = vmul.f32 %v224, 0.1
    %v488 = vmul.f32 %v226, 0.1
    %v489 = vmul.f32 %v228, 0.1
    %v490 = vmul.f32 %v232, 0.1
    %v491 = vmul.f32 %v234, 0.1
    %v492 = vmul.f32 %v236, 0.1
    %v493 = vmul.f32 %v238, 0.1
    %v494 = vmul.f32 %v242, 0.1
    %v495 = vmul.f32 %v244, 0.1
    %v496 = vmul.f32 %v246, 0.1
    %v497 = vmul.f32 %v248, 0.1
    %v498 = vmul.f32 %v252, 0.1
    %v499 = vmul.f32 %v254, 0.1
    %v500 = vmul.f32 %v256, 0.1
    %v501 = vmul.f32 %v258, 0.1
    %v502 = vmul.f32 %v262, 0.1
    %v503 = vmul.f32 %v264, 0.1
    %v504 = vmul.f32 %v266, 0.1
    %v505 = vmul.f32 %v268, 0.1
    %v506 = vmul.f32 %v272, 0.1
    %v507 = vmul.f32 %v274, 0.1
    %v508 = vmul.f32 %v276, 0.1
    %v509 = vmul.f32 %v278, 0.1
    %v510 = vmul.f32 %v282, 0.1
    %v511 = vmul.f32 %v284, 0.1
    %v512 = vmul.f32 %v286, 0.1
    %v513 = vmul.f32 %v288, 0.1
    %v514 = vmul.f32 %v292, 0.1
    %v515 = vmul.f32 %v294, 0.1
    %v516 = vmul.f32 %v296, 0.1
    %v517 = vmul.f32 %v298, 0.1
    %v518 = vmul.f32 %v302, 0.1
    %v519 = vmul.f32 %v304, 0.1
    %v520 = vmul.f32 %v306, 0.1
    %v521 = vmul.f32 %v308, 0.1
    %v522 = vmul.f32 %v312, 0.1
    %v523 = vmul.f32 %v314, 0.1
    %v524 = vmul.f32 %v316, 0.1
    %v525 = vmul.f32 %v318, 0.1
    %v526 = vmul.f32 %v322, 0.1
    %v527 = vmul.f32 %v324, 0.1
    %v528 = vmul.f32 %v326, 0.1
    %v529 = vmul.f32 %v328, 0.1
    %v530 = vmul.f32 %v332, 0.1
    %v531 = vmul.f32 %v334, 0.1
    %v532 = vmul.f32 %v336, 0.1
    %v533 = vmul.f32 %v338, 0.1
    %v534 = vmul.f32 %v342, 0.1
    %v535 = vmul.f32 %v344, 0.1
    %v536 = vmul.f32 %v346, 0.1
    %v537 = vmul.f32 %v348, 0.1
    %v538 = vmul.f32 %v352, 0.1
    %v539 = vmul.f32 %v354, 0.1
    %v540 = vmul.f32 %v356, 0.1
    %v541 = vmul.f32 %v358, 0.1
    %v542 = vmul.f32 %v362, 0.1
    %v543 = vmul.f32 %v364, 0.1
    %v544 = vmul.f32 %v366, 0.1
    %v545 = vmul.f32 %v368, 0.1
    %v546 = vmul.f32 %v372, 0.1
    %v547 = vmul.f32 %v374, 0.1
    %v548 = vmul.f32 %v376, 0.1
    %v549 = vmul.f32 %v378, 0.1
    %v550 = vmul.f32 %v382, 0.1
    %v551 = vmul.f32 %v384, 0.1
    %v552 = vmul.f32 %v386, 0.1
    %v553 = vmul.f32 %v388, 0.1
    %v554 = vmul.f32 %v392, 0.1
    %v555 = vmul.f32 %v394, 0.1
    %v556 = vmul.f32 %v396, 0.1
    %v557 = vmul.f32 %v398, 0.1
    %v558 = vmul.f32 %v402, 0.1
    %v559 = vmul.f32 %v404, 0.1
    %v560 = vmul.f32 %v406, 0.1
    %v561 = vmul.f32 %v408, 0.1
    %v562 = vsel %vm410, %v222, %v486
    %v563 = vsel %vm411, %v224, %v487
    %v564 = vsel %vm412, %v226, %v488
    %v565 = vsel %vm413, %v228, %v489
    %v566 = vsel %vm414, %v232, %v490
    %v567 = vsel %vm415, %v234, %v491
    %v568 = vsel %vm416, %v236, %v492
    %v569 = vsel %vm417, %v238, %v493
    %v570 = vsel %vm418, %v242, %v494
    %v571 = vsel %vm419, %v244, %v495
    %v572 = vsel %vm420, %v246, %v496
    %v573 = vsel %vm421, %v248, %v497
    %v574 = vsel %vm422, %v252, %v498
    %v575 = vsel %vm423, %v254, %v499
    %v576 = vsel %vm424, %v256, %v500
    %v577 = vsel %vm425, %v258, %v501
    %v578 = vsel %vm426, %v262, %v502
    %v579 = vsel %vm427, %v264, %v503
    %v580 = vsel %vm428, %v266, %v504
    %v581 = vsel %vm429, %v268, %v505
    %v582 = vsel %vm430, %v272, %v506
    %v583 = vsel %vm431, %v274, %v507
    %v584 = vsel %vm432, %v276, %v508
    %v585 = vsel %vm433, %v278, %v509
    %v586 = vsel %vm434, %v282, %v510
    %v587 = vsel %vm435, %v284, %v511
    %v588 = vsel %vm436, %v286, %v512
    %v589 = vsel %vm437, %v288, %v513
    %v590 = vsel %vm438, %v292, %v514
    %v591 = vsel %vm439, %v294, %v515
    %v592 = vsel %vm440, %v296, %v516
    %v593 = vsel %vm441, %v298, %v517
    %v594 = vsel %vm442, %v302, %v518
    %v595 = vsel %vm443, %v304, %v519
    %v596 = vsel %vm444, %v306, %v520
    %v597 = vsel %vm445, %v308, %v521
    %v598 = vsel %vm446, %v312, %v522
    %v599 = vsel %vm447, %v314, %v523
    %v600 = vsel %vm448, %v316, %v524
    %v601 = vsel %vm449, %v318, %v525
    %v602 = vsel %vm450, %v322, %v526
    %v603 = vsel %vm451, %v324, %v527
    %v604 = vsel %vm452, %v326, %v528
    %v605 = vsel %vm453, %v328, %v529
    %v606 = vsel %vm454, %v332, %v530
    %v607 = vsel %vm455, %v334, %v531
    %v608 = vsel %vm456, %v336, %v532
    %v609 = vsel %vm457, %v338, %v533
    %v610 = vsel %vm458, %v342, %v534
    %v611 = vsel %vm459, %v344, %v535
    %v612 = vsel %vm460, %v346, %v536
    %v613 = vsel %vm461, %v348, %v537
    %v614 = vsel %vm462, %v352, %v538
    %v615 = vsel %vm463, %v354, %v539
    %v616 = vsel %vm464, %v356, %v540
    %v617 = vsel %vm465, %v358, %v541
    %v618 = vsel %vm466, %v362, %v542
    %v619 = vsel %vm467, %v364, %v543
    %v620 = vsel %vm468, %v366, %v544
    %v621 = vsel %vm469, %v368, %v545
    %v622 = vsel %vm470, %v372, %v546
    %v623 = vsel %vm471, %v374, %v547
    %v624 = vsel %vm472, %v376, %v548
    %v625 = vsel %vm473, %v378, %v549
    %v626 = vsel %vm474, %v382, %v550
    %v627 = vsel %vm475, %v384, %v551
    %v628 = vsel %vm476, %v386, %v552
    %v629 = vsel %vm477, %v388, %v553
    %v630 = vsel %vm478, %v392, %v554
    %v631 = vsel %vm479, %v394, %v555
    %v632 = vsel %vm480, %v396, %v556
    %v633 = vsel %vm481, %v398, %v557
    %v634 = vsel %vm482, %v402, %v558
    %v635 = vsel %vm483, %v404, %v559
    %v636 = vsel %vm484, %v406, %v560
    %v637 = vsel %vm485, %v408, %v561
    %v638 = vpack.c.bf16 %v564, %v562
    %v639 = vpack.c.bf16 %v565, %v563
    %v640 = vpack.c.bf16 %v568, %v566
    %v641 = vpack.c.bf16 %v569, %v567
    %v642 = vpack.c.bf16 %v572, %v570
    %v643 = vpack.c.bf16 %v573, %v571
    %v644 = vpack.c.bf16 %v576, %v574
    %v645 = vpack.c.bf16 %v577, %v575
    %v646 = vpack.c.bf16 %v580, %v578
    %v647 = vpack.c.bf16 %v581, %v579
    %v648 = vpack.c.bf16 %v584, %v582
    %v649 = vpack.c.bf16 %v585, %v583
    %v650 = vpack.c.bf16 %v588, %v586
    %v651 = vpack.c.bf16 %v589, %v587
    %v652 = vpack.c.bf16 %v592, %v590
    %v653 = vpack.c.bf16 %v593, %v591
    %v654 = vpack.c.bf16 %v596, %v594
    %v655 = vpack.c.bf16 %v597, %v595
    %v656 = vpack.c.bf16 %v600, %v598
    %v657 = vpack.c.bf16 %v601, %v599
    %v658 = vpack.c.bf16 %v604, %v602
    %v659 = vpack.c.bf16 %v605, %v603
    %v660 = vpack.c.bf16 %v608, %v606
    %v661 = vpack.c.bf16 %v609, %v607
    %v662 = vpack.c.bf16 %v612, %v610
    %v663 = vpack.c.bf16 %v613, %v611
    %v664 = vpack.c.bf16 %v616, %v614
    %v665 = vpack.c.bf16 %v617, %v615
    %v666 = vpack.c.bf16 %v620, %v618
    %v667 = vpack.c.bf16 %v621, %v619
    %v668 = vpack.c.bf16 %v624, %v622
    %v669 = vpack.c.bf16 %v625, %v623
    %v670 = vpack.c.bf16 %v628, %v626
    %v671 = vpack.c.bf16 %v629, %v627
    %v672 = vpack.c.bf16 %v632, %v630
    %v673 = vpack.c.bf16 %v633, %v631
    %v674 = vpack.c.bf16 %v636, %v634
    %v675 = vpack.c.bf16 %v637, %v635
    %v676 = vld [vmem:[%s3] sm:$0xff]
    %v677 = vld [vmem:[%s3 + $0x8] sm:$0xff]
    %v678 = vld [vmem:[%s3 + $0x10] sm:$0xff]
    %v679 = vld [vmem:[%s3 + $0x18] sm:$0xff]
    %v680 = vld [vmem:[%s3 + $0x20] sm:$0xff]
    %v681 = vld [vmem:[%s3 + $0x28] sm:$0xff]
    %v682 = vld [vmem:[%s3 + $0x30] sm:$0xff]
    %v683 = vld [vmem:[%s3 + $0x38] sm:$0xff]
    %v684 = vld [vmem:[%s3 + $0x40] sm:$0xff]
    %v685 = vld [vmem:[%s3 + $0x48] sm:$0xff]
    %v686 = vld [vmem:[%s3 + $0x50] sm:$0xff]
    %v687 = vld [vmem:[%s3 + $0x58] sm:$0xff]
    %v688 = vld [vmem:[%s3 + $0x60] sm:$0xff]
    %v689 = vld [vmem:[%s3 + $0x68] sm:$0xff]
    %v690 = vld [vmem:[%s3 + $0x70] sm:$0xff]
    %v691 = vld [vmem:[%s3 + $0x78] sm:$0xff]
    %v692 = vld [vmem:[%s3 + $0x80] sm:$0xff]
    %v693 = vld [vmem:[%s3 + $0x88] sm:$0xff]
    %v694 = vld [vmem:[%s3 + $0x90] sm:$0xff]
    %v695 = vld [vmem:[%s3 + $0x98] sm:$0xff]
    %v696 = vld [vmem:[%s3 + $0xa0] sm:$0xff]
    %v697 = vld [vmem:[%s3 + $0xa8] sm:$0xff]
    %v698 = vld [vmem:[%s3 + $0xb0] sm:$0xff]
    %v699 = vld [vmem:[%s3 + $0xb8] sm:$0xff]
    %v700 = vld [vmem:[%s3 + $0xc0] sm:$0xff]
    %v701 = vld [vmem:[%s3 + $0xc8] sm:$0xff]
    %v702 = vld [vmem:[%s3 + $0xd0] sm:$0xff]
    %v703 = vld [vmem:[%s3 + $0xd8] sm:$0xff]
    %v704 = vld [vmem:[%s3 + $0xe0] sm:$0xff]
    %v705 = vld [vmem:[%s3 + $0xe8] sm:$0xff]
    %v706 = vld [vmem:[%s3 + $0xf0] sm:$0xff]
    %v707 = vld [vmem:[%s3 + $0xf8] sm:$0xff]
    %v708 = vld [vmem:[%s4] sm:$0x3]
    %v710 = vlaneseq
    %v711 = vshrl.u32 %v710, 7
    %v712 = vsub.s32 0, %v711
    %v713 = vrot.slane %v708, %v712
    %v714 = vlaneseq
    %v715 = vshrl.u32 %v714, 7
    %v716 = vsub.s32 1, %v715
    %v717 = vrot.slane %v708, %v716
    %v752 = vunpack.c.l.b16 %v676
    %v753 = vunpack.c.h.b16 %v676
    %v754 = vunpack.c.l.b16 %v677
    %v755 = vunpack.c.h.b16 %v677
    %v756 = vunpack.c.l.b16 %v678
    %v757 = vunpack.c.h.b16 %v678
    %v758 = vunpack.c.l.b16 %v679
    %v759 = vunpack.c.h.b16 %v679
    %v760 = vunpack.c.l.b16 %v680
    %v761 = vunpack.c.h.b16 %v680
    %v762 = vunpack.c.l.b16 %v681
    %v763 = vunpack.c.h.b16 %v681
    %v764 = vunpack.c.l.b16 %v682
    %v765 = vunpack.c.h.b16 %v682
    %v766 = vunpack.c.l.b16 %v683
    %v767 = vunpack.c.h.b16 %v683
    %v768 = vunpack.c.l.b16 %v684
    %v769 = vunpack.c.h.b16 %v684
    %v770 = vunpack.c.l.b16 %v685
    %v771 = vunpack.c.h.b16 %v685
    %v772 = vunpack.c.l.b16 %v686
    %v773 = vunpack.c.h.b16 %v686
    %v774 = vunpack.c.l.b16 %v687
    %v775 = vunpack.c.h.b16 %v687
    %v776 = vunpack.c.l.b16 %v688
    %v777 = vunpack.c.h.b16 %v688
    %v778 = vunpack.c.l.b16 %v689
    %v779 = vunpack.c.h.b16 %v689
    %v780 = vunpack.c.l.b16 %v690
    %v781 = vunpack.c.h.b16 %v690
    %v782 = vunpack.c.l.b16 %v691
    %v783 = vunpack.c.h.b16 %v691
    %v784 = vunpack.c.l.b16 %v692
    %v785 = vunpack.c.h.b16 %v692
    %v786 = vunpack.c.l.b16 %v693
    %v787 = vunpack.c.h.b16 %v693
    %v788 = vunpack.c.l.b16 %v694
    %v789 = vunpack.c.h.b16 %v694
    %v790 = vunpack.c.l.b16 %v695
    %v791 = vunpack.c.h.b16 %v695
    %v792 = vunpack.c.l.b16 %v696
    %v793 = vunpack.c.h.b16 %v696
    %v794 = vunpack.c.l.b16 %v697
    %v795 = vunpack.c.h.b16 %v697
    %v796 = vunpack.c.l.b16 %v698
    %v797 = vunpack.c.h.b16 %v698
    %v798 = vunpack.c.l.b16 %v699
    %v799 = vunpack.c.h.b16 %v699
    %v800 = vunpack.c.l.b16 %v700
    %v801 = vunpack.c.h.b16 %v700
    %v802 = vunpack.c.l.b16 %v701
    %v803 = vunpack.c.h.b16 %v701
    %v804 = vunpack.c.l.b16 %v702
    %v805 = vunpack.c.h.b16 %v702
    %v806 = vunpack.c.l.b16 %v703
    %v807 = vunpack.c.h.b16 %v703
    %v808 = vunpack.c.l.b16 %v704
    %v809 = vunpack.c.h.b16 %v704
    %v810 = vunpack.c.l.b16 %v705
    %v811 = vunpack.c.h.b16 %v705
    %v812 = vunpack.c.l.b16 %v706
    %v813 = vunpack.c.h.b16 %v706
    %v814 = vunpack.c.l.b16 %v707
    %v815 = vunpack.c.h.b16 %v707
    %v816 = vpack.c.b16 %v754, %v752
    %v817 = vpack.c.b16 %v755, %v753
    %v818 = vpack.c.b16 %v758, %v756
    %v819 = vpack.c.b16 %v759, %v757
    %v820 = vpack.c.b16 %v762, %v760
    %v821 = vpack.c.b16 %v763, %v761
    %v822 = vpack.c.b16 %v766, %v764
    %v823 = vpack.c.b16 %v767, %v765
    %v824 = vpack.c.b16 %v770, %v768
    %v825 = vpack.c.b16 %v771, %v769
    %v826 = vpack.c.b16 %v774, %v772
    %v827 = vpack.c.b16 %v775, %v773
    %v828 = vpack.c.b16 %v778, %v776
    %v829 = vpack.c.b16 %v779, %v777
    %v830 = vpack.c.b16 %v782, %v780
    %v831 = vpack.c.b16 %v783, %v781
    %v832 = vpack.c.b16 %v786, %v784
    %v833 = vpack.c.b16 %v787, %v785
    %v834 = vpack.c.b16 %v790, %v788
    %v835 = vpack.c.b16 %v791, %v789
    %v836 = vpack.c.b16 %v794, %v792
    %v837 = vpack.c.b16 %v795, %v793
    %v838 = vpack.c.b16 %v798, %v796
    %v839 = vpack.c.b16 %v799, %v797
    %v840 = vpack.c.b16 %v802, %v800
    %v841 = vpack.c.b16 %v803, %v801
    %v842 = vpack.c.b16 %v806, %v804
    %v843 = vpack.c.b16 %v807, %v805
    %v844 = vpack.c.b16 %v810, %v808
    %v845 = vpack.c.b16 %v811, %v809
    %v846 = vpack.c.b16 %v814, %v812
    %v847 = vpack.c.b16 %v815, %v813
    %880 = vmatprep.subr.bf16.mxu0 %v817
    %881 = vmatpush1.bf16.msra.mxu0 %v816
    %882 = vmatprep.subr.bf16.mxu0 %v819
    %883 = vmatpush1.bf16.msra.mxu0 %v818
    %884 = vmatprep.subr.bf16.mxu0 %v821
    %885 = vmatpush1.bf16.msra.mxu0 %v820
    %886 = vmatprep.subr.bf16.mxu0 %v823
    %887 = vmatpush1.bf16.msra.mxu0 %v822
    %888 = vmatprep.subr.bf16.mxu0 %v825
    %889 = vmatpush1.bf16.msra.mxu0 %v824
    %890 = vmatprep.subr.bf16.mxu0 %v827
    %891 = vmatpush1.bf16.msra.mxu0 %v826
    %892 = vmatprep.subr.bf16.mxu0 %v829
    %893 = vmatpush1.bf16.msra.mxu0 %v828
    %894 = vmatprep.subr.bf16.mxu0 %v831
    %895 = vmatpush1.bf16.msra.mxu0 %v830
    %896 = vmatprep.subr.bf16.mxu0 %v833
    %897 = vmatpush1.bf16.msra.mxu0 %v832
    %898 = vmatprep.subr.bf16.mxu0 %v835
    %899 = vmatpush1.bf16.msra.mxu0 %v834
    %900 = vmatprep.subr.bf16.mxu0 %v837
    %901 = vmatpush1.bf16.msra.mxu0 %v836
    %902 = vmatprep.subr.bf16.mxu0 %v839
    %903 = vmatpush1.bf16.msra.mxu0 %v838
    %904 = vmatprep.subr.bf16.mxu0 %v841
    %905 = vmatpush1.bf16.msra.mxu0 %v840
    %906 = vmatprep.subr.bf16.mxu0 %v843
    %907 = vmatpush1.bf16.msra.mxu0 %v842
    %908 = vmatprep.subr.bf16.mxu0 %v845
    %909 = vmatpush1.bf16.msra.mxu0 %v844
    %910 = vmatprep.subr.bf16.mxu0 %v847
    %911 = vmatpush1.bf16.msra.mxu0 %v846
    %912 = vmatprep.mubr.bf16.mxu0 %v639
    %913 = vmatmul.mubr.bf16.gmra.mrb[0].mxu0 %v638
    %v914 = vpop.f32.mrb[0].mxu0
    %v915 = vadd.f32 %v713, %v914
    %v916 = vpop.f32.mrb[0].mxu0
    %v917 = vadd.f32 %v717, %v916
    %v918 = vpop.f32.mrb[0].mxu0
    %v919 = vadd.f32 %v713, %v918
    %v920 = vpop.f32.mrb[0].mxu0
    %v921 = vadd.f32 %v717, %v920
    %922 = vmatprep.mubr.bf16.mxu0 %v641
    %923 = vmatmul.mubr.bf16.gmra.mrb[0].mxu0 %v640
    %v924 = vpop.f32.mrb[0].mxu0
    %v925 = vadd.f32 %v713, %v924
    %v926 = vpop.f32.mrb[0].mxu0
    %v927 = vadd.f32 %v717, %v926
    %v928 = vpop.f32.mrb[0].mxu0
    %v929 = vadd.f32 %v713, %v928
    %v930 = vpop.f32.mrb[0].mxu0
    %v931 = vadd.f32 %v717, %v930
    %932 = vmatprep.mubr.bf16.mxu0 %v643
    %933 = vmatmul.mubr.bf16.gmra.mrb[0].mxu0 %v642
    %v934 = vpop.f32.mrb[0].mxu0
    %v935 = vadd.f32 %v713, %v934
    %v936 = vpop.f32.mrb[0].mxu0
    %v937 = vadd.f32 %v717, %v936
    %v938 = vpop.f32.mrb[0].mxu0
    %v939 = vadd.f32 %v713, %v938
    %v940 = vpop.f32.mrb[0].mxu0
    %v941 = vadd.f32 %v717, %v940
    %942 = vmatprep.mubr.bf16.mxu0 %v645
    %943 = vmatmul.mubr.bf16.gmra.mrb[0].mxu0 %v644
    %v944 = vpop.f32.mrb[0].mxu0
    %v945 = vadd.f32 %v713, %v944
    %v946 = vpop.f32.mrb[0].mxu0
    %v947 = vadd.f32 %v717, %v946
    %v948 = vpop.f32.mrb[0].mxu0
    %v949 = vadd.f32 %v713, %v948
    %v950 = vpop.f32.mrb[0].mxu0
    %v951 = vadd.f32 %v717, %v950
    %952 = vmatprep.mubr.bf16.mxu0 %v647
    %953 = vmatmul.mubr.bf16.gmra.mrb[0].mxu0 %v646
    %v954 = vpop.f32.mrb[0].mxu0
    %v955 = vadd.f32 %v713, %v954
    %v956 = vpop.f32.mrb[0].mxu0
    %v957 = vadd.f32 %v717, %v956
    %v958 = vpop.f32.mrb[0].mxu0
    %v959 = vadd.f32 %v713, %v958
    %v960 = vpop.f32.mrb[0].mxu0
    %v961 = vadd.f32 %v717, %v960
    %962 = vmatprep.mubr.bf16.mxu0 %v649
    %963 = vmatmul.mubr.bf16.gmra.mrb[0].mxu0 %v648
    %v964 = vpop.f32.mrb[0].mxu0
    %v965 = vadd.f32 %v713, %v964
    %v966 = vpop.f32.mrb[0].mxu0
    %v967 = vadd.f32 %v717, %v966
    %v968 = vpop.f32.mrb[0].mxu0
    %v969 = vadd.f32 %v713, %v968
    %v970 = vpop.f32.mrb[0].mxu0
    %v971 = vadd.f32 %v717, %v970
    %972 = vmatprep.mubr.bf16.mxu0 %v651
    %973 = vmatmul.mubr.bf16.gmra.mrb[0].mxu0 %v650
    %v974 = vpop.f32.mrb[0].mxu0
    %v975 = vadd.f32 %v713, %v974
    %v976 = vpop.f32.mrb[0].mxu0
    %v977 = vadd.f32 %v717, %v976
    %v978 = vpop.f32.mrb[0].mxu0
    %v979 = vadd.f32 %v713, %v978
    %v980 = vpop.f32.mrb[0].mxu0
    %v981 = vadd.f32 %v717, %v980
    %982 = vmatprep.mubr.bf16.mxu0 %v653
    %983 = vmatmul.mubr.bf16.gmra.mrb[0].mxu0 %v652
    %v984 = vpop.f32.mrb[0].mxu0
    %v985 = vadd.f32 %v713, %v984
    %v986 = vpop.f32.mrb[0].mxu0
    %v987 = vadd.f32 %v717, %v986
    %v988 = vpop.f32.mrb[0].mxu0
    %v989 = vadd.f32 %v713, %v988
    %v990 = vpop.f32.mrb[0].mxu0
    %v991 = vadd.f32 %v717, %v990
    %992 = vmatprep.mubr.bf16.mxu0 %v655
    %993 = vmatmul.mubr.bf16.gmra.mrb[0].mxu0 %v654
    %v994 = vpop.f32.mrb[0].mxu0
    %v995 = vadd.f32 %v713, %v994
    %v996 = vpop.f32.mrb[0].mxu0
    %v997 = vadd.f32 %v717, %v996
    %v998 = vpop.f32.mrb[0].mxu0
    %v999 = vadd.f32 %v713, %v998
    %v1000 = vpop.f32.mrb[0].mxu0
    %v1001 = vadd.f32 %v717, %v1000
    %1002 = vmatprep.mubr.bf16.mxu0 %v657
    %1003 = vmatmul.mubr.bf16.gmra.mrb[0].mxu0 %v656
    %v1004 = vpop.f32.mrb[0].mxu0
    %v1005 = vadd.f32 %v713, %v1004
    %v1006 = vpop.f32.mrb[0].mxu0
    %v1007 = vadd.f32 %v717, %v1006
    %v1008 = vpop.f32.mrb[0].mxu0
    %v1009 = vadd.f32 %v713, %v1008
    %v1010 = vpop.f32.mrb[0].mxu0
    %v1011 = vadd.f32 %v717, %v1010
    %1012 = vmatprep.mubr.bf16.mxu0 %v659
    %1013 = vmatmul.mubr.bf16.gmra.mrb[0].mxu0 %v658
    %v1014 = vpop.f32.mrb[0].mxu0
    %v1015 = vadd.f32 %v713, %v1014
    %v1016 = vpop.f32.mrb[0].mxu0
    %v1017 = vadd.f32 %v717, %v1016
    %v1018 = vpop.f32.mrb[0].mxu0
    %v1019 = vadd.f32 %v713, %v1018
    %v1020 = vpop.f32.mrb[0].mxu0
    %v1021 = vadd.f32 %v717, %v1020
    %1022 = vmatprep.mubr.bf16.mxu0 %v661
    %1023 = vmatmul.mubr.bf16.gmra.mrb[0].mxu0 %v660
    %v1024 = vpop.f32.mrb[0].mxu0
    %v1025 = vadd.f32 %v713, %v1024
    %v1026 = vpop.f32.mrb[0].mxu0
    %v1027 = vadd.f32 %v717, %v1026
    %v1028 = vpop.f32.mrb[0].mxu0
    %v1029 = vadd.f32 %v713, %v1028
    %v1030 = vpop.f32.mrb[0].mxu0
    %v1031 = vadd.f32 %v717, %v1030
    %1032 = vmatprep.mubr.bf16.mxu0 %v663
    %1033 = vmatmul.mubr.bf16.gmra.mrb[0].mxu0 %v662
    %v1034 = vpop.f32.mrb[0].mxu0
    %v1035 = vadd.f32 %v713, %v1034
    %v1036 = vpop.f32.mrb[0].mxu0
    %v1037 = vadd.f32 %v717, %v1036
    %v1038 = vpop.f32.mrb[0].mxu0
    %v1039 = vadd.f32 %v713, %v1038
    %v1040 = vpop.f32.mrb[0].mxu0
    %v1041 = vadd.f32 %v717, %v1040
    %1042 = vmatprep.mubr.bf16.mxu0 %v665
    %1043 = vmatmul.mubr.bf16.gmra.mrb[0].mxu0 %v664
    %v1044 = vpop.f32.mrb[0].mxu0
    %v1045 = vadd.f32 %v713, %v1044
    %v1046 = vpop.f32.mrb[0].mxu0
    %v1047 = vadd.f32 %v717, %v1046
    %v1048 = vpop.f32.mrb[0].mxu0
    %v1049 = vadd.f32 %v713, %v1048
    %v1050 = vpop.f32.mrb[0].mxu0
    %v1051 = vadd.f32 %v717, %v1050
    %1052 = vmatprep.mubr.bf16.mxu0 %v667
    %1053 = vmatmul.mubr.bf16.gmra.mrb[0].mxu0 %v666
    %v1054 = vpop.f32.mrb[0].mxu0
    %v1055 = vadd.f32 %v713, %v1054
    %v1056 = vpop.f32.mrb[0].mxu0
    %v1057 = vadd.f32 %v717, %v1056
    %v1058 = vpop.f32.mrb[0].mxu0
    %v1059 = vadd.f32 %v713, %v1058
    %v1060 = vpop.f32.mrb[0].mxu0
    %v1061 = vadd.f32 %v717, %v1060
    %1062 = vmatprep.mubr.bf16.mxu0 %v669
    %1063 = vmatmul.mubr.bf16.gmra.mrb[0].mxu0 %v668
    %v1064 = vpop.f32.mrb[0].mxu0
    %v1065 = vadd.f32 %v713, %v1064
    %v1066 = vpop.f32.mrb[0].mxu0
    %v1067 = vadd.f32 %v717, %v1066
    %v1068 = vpop.f32.mrb[0].mxu0
    %v1069 = vadd.f32 %v713, %v1068
    %v1070 = vpop.f32.mrb[0].mxu0
    %v1071 = vadd.f32 %v717, %v1070
    %1072 = vmatprep.mubr.bf16.mxu0 %v671
    %1073 = vmatmul.mubr.bf16.gmra.mrb[0].mxu0 %v670
    %v1074 = vpop.f32.mrb[0].mxu0
    %v1075 = vadd.f32 %v713, %v1074
    %v1076 = vpop.f32.mrb[0].mxu0
    %v1077 = vadd.f32 %v717, %v1076
    %v1078 = vpop.f32.mrb[0].mxu0
    %v1079 = vadd.f32 %v713, %v1078
    %v1080 = vpop.f32.mrb[0].mxu0
    %v1081 = vadd.f32 %v717, %v1080
    %1082 = vmatprep.mubr.bf16.mxu0 %v673
    %1083 = vmatmul.mubr.bf16.gmra.mrb[0].mxu0 %v672
    %v1084 = vpop.f32.mrb[0].mxu0
    %v1085 = vadd.f32 %v713, %v1084
    %v1086 = vpop.f32.mrb[0].mxu0
    %v1087 = vadd.f32 %v717, %v1086
    %v1088 = vpop.f32.mrb[0].mxu0
    %v1089 = vadd.f32 %v713, %v1088
    %v1090 = vpop.f32.mrb[0].mxu0
    %v1091 = vadd.f32 %v717, %v1090
    %1092 = vmatprep.mubr.bf16.mxu0 %v675
    %1093 = vmatmul.mubr.bf16.gmra.mrb[0].mxu0 %v674
    %v1094 = vpop.f32.mrb[0].mxu0
    %v1095 = vadd.f32 %v713, %v1094
    %v1096 = vpop.f32.mrb[0].mxu0
    %v1097 = vadd.f32 %v717, %v1096
    %v1098 = vpop.f32.mrb[0].mxu0
    %v1099 = vadd.f32 %v713, %v1098
    %v1100 = vpop.f32.mrb[0].mxu0
    %v1101 = vadd.f32 %v717, %v1100
    %1102 = vdwg.mxu0
    %vm1103 = vcmp.gt.f32.partialorder %v915, 0.0
    %vm1104 = vcmp.gt.f32.partialorder %v917, 0.0
    %vm1105 = vcmp.gt.f32.partialorder %v919, 0.0
    %vm1106 = vcmp.gt.f32.partialorder %v921, 0.0
    %vm1107 = vcmp.gt.f32.partialorder %v925, 0.0
    %vm1108 = vcmp.gt.f32.partialorder %v927, 0.0
    %vm1109 = vcmp.gt.f32.partialorder %v929, 0.0
    %vm1110 = vcmp.gt.f32.partialorder %v931, 0.0
    %vm1111 = vcmp.gt.f32.partialorder %v935, 0.0
    %vm1112 = vcmp.gt.f32.partialorder %v937, 0.0
    %vm1113 = vcmp.gt.f32.partialorder %v939, 0.0
    %vm1114 = vcmp.gt.f32.partialorder %v941, 0.0
    %vm1115 = vcmp.gt.f32.partialorder %v945, 0.0
    %vm1116 = vcmp.gt.f32.partialorder %v947, 0.0
    %vm1117 = vcmp.gt.f32.partialorder %v949, 0.0
    %vm1118 = vcmp.gt.f32.partialorder %v951, 0.0
    %vm1119 = vcmp.gt.f32.partialorder %v955, 0.0
    %vm1120 = vcmp.gt.f32.partialorder %v957, 0.0
    %vm1121 = vcmp.gt.f32.partialorder %v959, 0.0
    %vm1122 = vcmp.gt.f32.partialorder %v961, 0.0
    %vm1123 = vcmp.gt.f32.partialorder %v965, 0.0
    %vm1124 = vcmp.gt.f32.partialorder %v967, 0.0
    %vm1125 = vcmp.gt.f32.partialorder %v969, 0.0
    %vm1126 = vcmp.gt.f32.partialorder %v971, 0.0
    %vm1127 = vcmp.gt.f32.partialorder %v975, 0.0
    %vm1128 = vcmp.gt.f32.partialorder %v977, 0.0
    %vm1129 = vcmp.gt.f32.partialorder %v979, 0.0
    %vm1130 = vcmp.gt.f32.partialorder %v981, 0.0
    %vm1131 = vcmp.gt.f32.partialorder %v985, 0.0
    %vm1132 = vcmp.gt.f32.partialorder %v987, 0.0
    %vm1133 = vcmp.gt.f32.partialorder %v989, 0.0
    %vm1134 = vcmp.gt.f32.partialorder %v991, 0.0
    %vm1135 = vcmp.gt.f32.partialorder %v995, 0.0
    %vm1136 = vcmp.gt.f32.partialorder %v997, 0.0
    %vm1137 = vcmp.gt.f32.partialorder %v999, 0.0
    %vm1138 = vcmp.gt.f32.partialorder %v1001, 0.0
    %vm1139 = vcmp.gt.f32.partialorder %v1005, 0.0
    %vm1140 = vcmp.gt.f32.partialorder %v1007, 0.0
    %vm1141 = vcmp.gt.f32.partialorder %v1009, 0.0
    %vm1142 = vcmp.gt.f32.partialorder %v1011, 0.0
    %vm1143 = vcmp.gt.f32.partialorder %v1015, 0.0
    %vm1144 = vcmp.gt.f32.partialorder %v1017, 0.0
    %vm1145 = vcmp.gt.f32.partialorder %v1019, 0.0
    %vm1146 = vcmp.gt.f32.partialorder %v1021, 0.0
    %vm1147 = vcmp.gt.f32.partialorder %v1025, 0.0
    %vm1148 = vcmp.gt.f32.partialorder %v1027, 0.0
    %vm1149 = vcmp.gt.f32.partialorder %v1029, 0.0
    %vm1150 = vcmp.gt.f32.partialorder %v1031, 0.0
    %vm1151 = vcmp.gt.f32.partialorder %v1035, 0.0
    %vm1152 = vcmp.gt.f32.partialorder %v1037, 0.0
    %vm1153 = vcmp.gt.f32.partialorder %v1039, 0.0
    %vm1154 = vcmp.gt.f32.partialorder %v1041, 0.0
    %vm1155 = vcmp.gt.f32.partialorder %v1045, 0.0
    %vm1156 = vcmp.gt.f32.partialorder %v1047, 0.0
    %vm1157 = vcmp.gt.f32.partialorder %v1049, 0.0
    %vm1158 = vcmp.gt.f32.partialorder %v1051, 0.0
    %vm1159 = vcmp.gt.f32.partialorder %v1055, 0.0
    %vm1160 = vcmp.gt.f32.partialorder %v1057, 0.0
    %vm1161 = vcmp.gt.f32.partialorder %v1059, 0.0
    %vm1162 = vcmp.gt.f32.partialorder %v1061, 0.0
    %vm1163 = vcmp.gt.f32.partialorder %v1065, 0.0
    %vm1164 = vcmp.gt.f32.partialorder %v1067, 0.0
    %vm1165 = vcmp.gt.f32.partialorder %v1069, 0.0
    %vm1166 = vcmp.gt.f32.partialorder %v1071, 0.0
    %vm1167 = vcmp.gt.f32.partialorder %v1075, 0.0
    %vm1168 = vcmp.gt.f32.partialorder %v1077, 0.0
    %vm1169 = vcmp.gt.f32.partialorder %v1079, 0.0
    %vm1170 = vcmp.gt.f32.partialorder %v1081, 0.0
    %vm1171 = vcmp.gt.f32.partialorder %v1085, 0.0
    %vm1172 = vcmp.gt.f32.partialorder %v1087, 0.0
    %vm1173 = vcmp.gt.f32.partialorder %v1089, 0.0
    %vm1174 = vcmp.gt.f32.partialorder %v1091, 0.0
    %vm1175 = vcmp.gt.f32.partialorder %v1095, 0.0
    %vm1176 = vcmp.gt.f32.partialorder %v1097, 0.0
    %vm1177 = vcmp.gt.f32.partialorder %v1099, 0.0
    %vm1178 = vcmp.gt.f32.partialorder %v1101, 0.0
    %v1179 = vmul.f32 %v915, 0.1
    %v1180 = vmul.f32 %v917, 0.1
    %v1181 = vmul.f32 %v919, 0.1
    %v1182 = vmul.f32 %v921, 0.1
    %v1183 = vmul.f32 %v925, 0.1
    %v1184 = vmul.f32 %v927, 0.1
    %v1185 = vmul.f32 %v929, 0.1
    %v1186 = vmul.f32 %v931, 0.1
    %v1187 = vmul.f32 %v935, 0.1
    %v1188 = vmul.f32 %v937, 0.1
    %v1189 = vmul.f32 %v939, 0.1
    %v1190 = vmul.f32 %v941, 0.1
    %v1191 = vmul.f32 %v945, 0.1
    %v1192 = vmul.f32 %v947, 0.1
    %v1193 = vmul.f32 %v949, 0.1
    %v1194 = vmul.f32 %v951, 0.1
    %v1195 = vmul.f32 %v955, 0.1
    %v1196 = vmul.f32 %v957, 0.1
    %v1197 = vmul.f32 %v959, 0.1
    %v1198 = vmul.f32 %v961, 0.1
    %v1199 = vmul.f32 %v965, 0.1
    %v1200 = vmul.f32 %v967, 0.1
    %v1201 = vmul.f32 %v969, 0.1
    %v1202 = vmul.f32 %v971, 0.1
    %v1203 = vmul.f32 %v975, 0.1
    %v1204 = vmul.f32 %v977, 0.1
    %v1205 = vmul.f32 %v979, 0.1
    %v1206 = vmul.f32 %v981, 0.1
    %v1207 = vmul.f32 %v985, 0.1
    %v1208 = vmul.f32 %v987, 0.1
    %v1209 = vmul.f32 %v989, 0.1
    %v1210 = vmul.f32 %v991, 0.1
    %v1211 = vmul.f32 %v995, 0.1
    %v1212 = vmul.f32 %v997, 0.1
    %v1213 = vmul.f32 %v999, 0.1
    %v1214 = vmul.f32 %v1001, 0.1
    %v1215 = vmul.f32 %v1005, 0.1
    %v1216 = vmul.f32 %v1007, 0.1
    %v1217 = vmul.f32 %v1009, 0.1
    %v1218 = vmul.f32 %v1011, 0.1
    %v1219 = vmul.f32 %v1015, 0.1
    %v1220 = vmul.f32 %v1017, 0.1
    %v1221 = vmul.f32 %v1019, 0.1
    %v1222 = vmul.f32 %v1021, 0.1
    %v1223 = vmul.f32 %v1025, 0.1
    %v1224 = vmul.f32 %v1027, 0.1
    %v1225 = vmul.f32 %v1029, 0.1
    %v1226 = vmul.f32 %v1031, 0.1
    %v1227 = vmul.f32 %v1035, 0.1
    %v1228 = vmul.f32 %v1037, 0.1
    %v1229 = vmul.f32 %v1039, 0.1
    %v1230 = vmul.f32 %v1041, 0.1
    %v1231 = vmul.f32 %v1045, 0.1
    %v1232 = vmul.f32 %v1047, 0.1
    %v1233 = vmul.f32 %v1049, 0.1
    %v1234 = vmul.f32 %v1051, 0.1
    %v1235 = vmul.f32 %v1055, 0.1
    %v1236 = vmul.f32 %v1057, 0.1
    %v1237 = vmul.f32 %v1059, 0.1
    %v1238 = vmul.f32 %v1061, 0.1
    %v1239 = vmul.f32 %v1065, 0.1
    %v1240 = vmul.f32 %v1067, 0.1
    %v1241 = vmul.f32 %v1069, 0.1
    %v1242 = vmul.f32 %v1071, 0.1
    %v1243 = vmul.f32 %v1075, 0.1
    %v1244 = vmul.f32 %v1077, 0.1
    %v1245 = vmul.f32 %v1079, 0.1
    %v1246 = vmul.f32 %v1081, 0.1
    %v1247 = vmul.f32 %v1085, 0.1
    %v1248 = vmul.f32 %v1087, 0.1
    %v1249 = vmul.f32 %v1089, 0.1
    %v1250 = vmul.f32 %v1091, 0.1
    %v1251 = vmul.f32 %v1095, 0.1
    %v1252 = vmul.f32 %v1097, 0.1
    %v1253 = vmul.f32 %v1099, 0.1
    %v1254 = vmul.f32 %v1101, 0.1
    %v1255 = vsel %vm1103, %v915, %v1179
    %v1256 = vsel %vm1104, %v917, %v1180
    %v1257 = vsel %vm1105, %v919, %v1181
    %v1258 = vsel %vm1106, %v921, %v1182
    %v1259 = vsel %vm1107, %v925, %v1183
    %v1260 = vsel %vm1108, %v927, %v1184
    %v1261 = vsel %vm1109, %v929, %v1185
    %v1262 = vsel %vm1110, %v931, %v1186
    %v1263 = vsel %vm1111, %v935, %v1187
    %v1264 = vsel %vm1112, %v937, %v1188
    %v1265 = vsel %vm1113, %v939, %v1189
    %v1266 = vsel %vm1114, %v941, %v1190
    %v1267 = vsel %vm1115, %v945, %v1191
    %v1268 = vsel %vm1116, %v947, %v1192
    %v1269 = vsel %vm1117, %v949, %v1193
    %v1270 = vsel %vm1118, %v951, %v1194
    %v1271 = vsel %vm1119, %v955, %v1195
    %v1272 = vsel %vm1120, %v957, %v1196
    %v1273 = vsel %vm1121, %v959, %v1197
    %v1274 = vsel %vm1122, %v961, %v1198
    %v1275 = vsel %vm1123, %v965, %v1199
    %v1276 = vsel %vm1124, %v967, %v1200
    %v1277 = vsel %vm1125, %v969, %v1201
    %v1278 = vsel %vm1126, %v971, %v1202
    %v1279 = vsel %vm1127, %v975, %v1203
    %v1280 = vsel %vm1128, %v977, %v1204
    %v1281 = vsel %vm1129, %v979, %v1205
    %v1282 = vsel %vm1130, %v981, %v1206
    %v1283 = vsel %vm1131, %v985, %v1207
    %v1284 = vsel %vm1132, %v987, %v1208
    %v1285 = vsel %vm1133, %v989, %v1209
    %v1286 = vsel %vm1134, %v991, %v1210
    %v1287 = vsel %vm1135, %v995, %v1211
    %v1288 = vsel %vm1136, %v997, %v1212
    %v1289 = vsel %vm1137, %v999, %v1213
    %v1290 = vsel %vm1138, %v1001, %v1214
    %v1291 = vsel %vm1139, %v1005, %v1215
    %v1292 = vsel %vm1140, %v1007, %v1216
    %v1293 = vsel %vm1141, %v1009, %v1217
    %v1294 = vsel %vm1142, %v1011, %v1218
    %v1295 = vsel %vm1143, %v1015, %v1219
    %v1296 = vsel %vm1144, %v1017, %v1220
    %v1297 = vsel %vm1145, %v1019, %v1221
    %v1298 = vsel %vm1146, %v1021, %v1222
    %v1299 = vsel %vm1147, %v1025, %v1223
    %v1300 = vsel %vm1148, %v1027, %v1224
    %v1301 = vsel %vm1149, %v1029, %v1225
    %v1302 = vsel %vm1150, %v1031, %v1226
    %v1303 = vsel %vm1151, %v1035, %v1227
    %v1304 = vsel %vm1152, %v1037, %v1228
    %v1305 = vsel %vm1153, %v1039, %v1229
    %v1306 = vsel %vm1154, %v1041, %v1230
    %v1307 = vsel %vm1155, %v1045, %v1231
    %v1308 = vsel %vm1156, %v1047, %v1232
    %v1309 = vsel %vm1157, %v1049, %v1233
    %v1310 = vsel %vm1158, %v1051, %v1234
    %v1311 = vsel %vm1159, %v1055, %v1235
    %v1312 = vsel %vm1160, %v1057, %v1236
    %v1313 = vsel %vm1161, %v1059, %v1237
    %v1314 = vsel %vm1162, %v1061, %v1238
    %v1315 = vsel %vm1163, %v1065, %v1239
    %v1316 = vsel %vm1164, %v1067, %v1240
    %v1317 = vsel %vm1165, %v1069, %v1241
    %v1318 = vsel %vm1166, %v1071, %v1242
    %v1319 = vsel %vm1167, %v1075, %v1243
    %v1320 = vsel %vm1168, %v1077, %v1244
    %v1321 = vsel %vm1169, %v1079, %v1245
    %v1322 = vsel %vm1170, %v1081, %v1246
    %v1323 = vsel %vm1171, %v1085, %v1247
    %v1324 = vsel %vm1172, %v1087, %v1248
    %v1325 = vsel %vm1173, %v1089, %v1249
    %v1326 = vsel %vm1174, %v1091, %v1250
    %v1327 = vsel %vm1175, %v1095, %v1251
    %v1328 = vsel %vm1176, %v1097, %v1252
    %v1329 = vsel %vm1177, %v1099, %v1253
    %v1330 = vsel %vm1178, %v1101, %v1254
    %v1331 = vpack.c.bf16 %v1257, %v1255
    %v1332 = vpack.c.bf16 %v1258, %v1256
    %v1333 = vpack.c.bf16 %v1261, %v1259
    %v1334 = vpack.c.bf16 %v1262, %v1260
    %v1335 = vpack.c.bf16 %v1265, %v1263
    %v1336 = vpack.c.bf16 %v1266, %v1264
    %v1337 = vpack.c.bf16 %v1269, %v1267
    %v1338 = vpack.c.bf16 %v1270, %v1268
    %v1339 = vpack.c.bf16 %v1273, %v1271
    %v1340 = vpack.c.bf16 %v1274, %v1272
    %v1341 = vpack.c.bf16 %v1277, %v1275
    %v1342 = vpack.c.bf16 %v1278, %v1276
    %v1343 = vpack.c.bf16 %v1281, %v1279
    %v1344 = vpack.c.bf16 %v1282, %v1280
    %v1345 = vpack.c.bf16 %v1285, %v1283
    %v1346 = vpack.c.bf16 %v1286, %v1284
    %v1347 = vpack.c.bf16 %v1289, %v1287
    %v1348 = vpack.c.bf16 %v1290, %v1288
    %v1349 = vpack.c.bf16 %v1293, %v1291
    %v1350 = vpack.c.bf16 %v1294, %v1292
    %v1351 = vpack.c.bf16 %v1297, %v1295
    %v1352 = vpack.c.bf16 %v1298, %v1296
    %v1353 = vpack.c.bf16 %v1301, %v1299
    %v1354 = vpack.c.bf16 %v1302, %v1300
    %v1355 = vpack.c.bf16 %v1305, %v1303
    %v1356 = vpack.c.bf16 %v1306, %v1304
    %v1357 = vpack.c.bf16 %v1309, %v1307
    %v1358 = vpack.c.bf16 %v1310, %v1308
    %v1359 = vpack.c.bf16 %v1313, %v1311
    %v1360 = vpack.c.bf16 %v1314, %v1312
    %v1361 = vpack.c.bf16 %v1317, %v1315
    %v1362 = vpack.c.bf16 %v1318, %v1316
    %v1363 = vpack.c.bf16 %v1321, %v1319
    %v1364 = vpack.c.bf16 %v1322, %v1320
    %v1365 = vpack.c.bf16 %v1325, %v1323
    %v1366 = vpack.c.bf16 %v1326, %v1324
    %v1367 = vpack.c.bf16 %v1329, %v1327
    %v1368 = vpack.c.bf16 %v1330, %v1328
    %v1369 = vld [vmem:[%s5] sm:$0xff]
    %v1370 = vld [vmem:[%s5 + $0x8] sm:$0xff]
    %v1371 = vld [vmem:[%s5 + $0x10] sm:$0xff]
    %v1372 = vld [vmem:[%s5 + $0x18] sm:$0xff]
    %v1373 = vld [vmem:[%s5 + $0x20] sm:$0xff]
    %v1374 = vld [vmem:[%s5 + $0x28] sm:$0xff]
    %v1375 = vld [vmem:[%s5 + $0x30] sm:$0xff]
    %v1376 = vld [vmem:[%s5 + $0x38] sm:$0xff]
    %v1377 = vld [vmem:[%s5 + $0x40] sm:$0xff]
    %v1378 = vld [vmem:[%s5 + $0x48] sm:$0xff]
    %v1379 = vld [vmem:[%s5 + $0x50] sm:$0xff]
    %v1380 = vld [vmem:[%s5 + $0x58] sm:$0xff]
    %v1381 = vld [vmem:[%s5 + $0x60] sm:$0xff]
    %v1382 = vld [vmem:[%s5 + $0x68] sm:$0xff]
    %v1383 = vld [vmem:[%s5 + $0x70] sm:$0xff]
    %v1384 = vld [vmem:[%s5 + $0x78] sm:$0xff]
    %v1385 = vld [vmem:[%s5 + $0x80] sm:$0xff]
    %v1386 = vld [vmem:[%s5 + $0x88] sm:$0xff]
    %v1387 = vld [vmem:[%s5 + $0x90] sm:$0xff]
    %v1388 = vld [vmem:[%s5 + $0x98] sm:$0xff]
    %v1389 = vld [vmem:[%s5 + $0xa0] sm:$0xff]
    %v1390 = vld [vmem:[%s5 + $0xa8] sm:$0xff]
    %v1391 = vld [vmem:[%s5 + $0xb0] sm:$0xff]
    %v1392 = vld [vmem:[%s5 + $0xb8] sm:$0xff]
    %v1393 = vld [vmem:[%s5 + $0xc0] sm:$0xff]
    %v1394 = vld [vmem:[%s5 + $0xc8] sm:$0xff]
    %v1395 = vld [vmem:[%s5 + $0xd0] sm:$0xff]
    %v1396 = vld [vmem:[%s5 + $0xd8] sm:$0xff]
    %v1397 = vld [vmem:[%s5 + $0xe0] sm:$0xff]
    %v1398 = vld [vmem:[%s5 + $0xe8] sm:$0xff]
    %v1399 = vld [vmem:[%s5 + $0xf0] sm:$0xff]
    %v1400 = vld [vmem:[%s5 + $0xf8] sm:$0xff]
    %v1401 = vld [vmem:[%s6] sm:$0x3]
    %v1403 = vlaneseq
    %v1404 = vshrl.u32 %v1403, 7
    %v1405 = vsub.s32 0, %v1404
    %v1406 = vrot.slane %v1401, %v1405
    %v1407 = vlaneseq
    %v1408 = vshrl.u32 %v1407, 7
    %v1409 = vsub.s32 1, %v1408
    %v1410 = vrot.slane %v1401, %v1409
    %v1445 = vunpack.c.l.b16 %v1369
    %v1446 = vunpack.c.h.b16 %v1369
    %v1447 = vunpack.c.l.b16 %v1370
    %v1448 = vunpack.c.h.b16 %v1370
    %v1449 = vunpack.c.l.b16 %v1371
    %v1450 = vunpack.c.h.b16 %v1371
    %v1451 = vunpack.c.l.b16 %v1372
    %v1452 = vunpack.c.h.b16 %v1372
    %v1453 = vunpack.c.l.b16 %v1373
    %v1454 = vunpack.c.h.b16 %v1373
    %v1455 = vunpack.c.l.b16 %v1374
    %v1456 = vunpack.c.h.b16 %v1374
    %v1457 = vunpack.c.l.b16 %v1375
    %v1458 = vunpack.c.h.b16 %v1375
    %v1459 = vunpack.c.l.b16 %v1376
    %v1460 = vunpack.c.h.b16 %v1376
    %v1461 = vunpack.c.l.b16 %v1377
    %v1462 = vunpack.c.h.b16 %v1377
    %v1463 = vunpack.c.l.b16 %v1378
    %v1464 = vunpack.c.h.b16 %v1378
    %v1465 = vunpack.c.l.b16 %v1379
    %v1466 = vunpack.c.h.b16 %v1379
    %v1467 = vunpack.c.l.b16 %v1380
    %v1468 = vunpack.c.h.b16 %v1380
    %v1469 = vunpack.c.l.b16 %v1381
    %v1470 = vunpack.c.h.b16 %v1381
    %v1471 = vunpack.c.l.b16 %v1382
    %v1472 = vunpack.c.h.b16 %v1382
    %v1473 = vunpack.c.l.b16 %v1383
    %v1474 = vunpack.c.h.b16 %v1383
    %v1475 = vunpack.c.l.b16 %v1384
    %v1476 = vunpack.c.h.b16 %v1384
    %v1477 = vunpack.c.l.b16 %v1385
    %v1478 = vunpack.c.h.b16 %v1385
    %v1479 = vunpack.c.l.b16 %v1386
    %v1480 = vunpack.c.h.b16 %v1386
    %v1481 = vunpack.c.l.b16 %v1387
    %v1482 = vunpack.c.h.b16 %v1387
    %v1483 = vunpack.c.l.b16 %v1388
    %v1484 = vunpack.c.h.b16 %v1388
    %v1485 = vunpack.c.l.b16 %v1389
    %v1486 = vunpack.c.h.b16 %v1389
    %v1487 = vunpack.c.l.b16 %v1390
    %v1488 = vunpack.c.h.b16 %v1390
    %v1489 = vunpack.c.l.b16 %v1391
    %v1490 = vunpack.c.h.b16 %v1391
    %v1491 = vunpack.c.l.b16 %v1392
    %v1492 = vunpack.c.h.b16 %v1392
    %v1493 = vunpack.c.l.b16 %v1393
    %v1494 = vunpack.c.h.b16 %v1393
    %v1495 = vunpack.c.l.b16 %v1394
    %v1496 = vunpack.c.h.b16 %v1394
    %v1497 = vunpack.c.l.b16 %v1395
    %v1498 = vunpack.c.h.b16 %v1395
    %v1499 = vunpack.c.l.b16 %v1396
    %v1500 = vunpack.c.h.b16 %v1396
    %v1501 = vunpack.c.l.b16 %v1397
    %v1502 = vunpack.c.h.b16 %v1397
    %v1503 = vunpack.c.l.b16 %v1398
    %v1504 = vunpack.c.h.b16 %v1398
    %v1505 = vunpack.c.l.b16 %v1399
    %v1506 = vunpack.c.h.b16 %v1399
    %v1507 = vunpack.c.l.b16 %v1400
    %v1508 = vunpack.c.h.b16 %v1400
    %v1509 = vpack.c.b16 %v1447, %v1445
    %v1510 = vpack.c.b16 %v1448, %v1446
    %v1511 = vpack.c.b16 %v1451, %v1449
    %v1512 = vpack.c.b16 %v1452, %v1450
    %v1513 = vpack.c.b16 %v1455, %v1453
    %v1514 = vpack.c.b16 %v1456, %v1454
    %v1515 = vpack.c.b16 %v1459, %v1457
    %v1516 = vpack.c.b16 %v1460, %v1458
    %v1517 = vpack.c.b16 %v1463, %v1461
    %v1518 = vpack.c.b16 %v1464, %v1462
    %v1519 = vpack.c.b16 %v1467, %v1465
    %v1520 = vpack.c.b16 %v1468, %v1466
    %v1521 = vpack.c.b16 %v1471, %v1469
    %v1522 = vpack.c.b16 %v1472, %v1470
    %v1523 = vpack.c.b16 %v1475, %v1473
    %v1524 = vpack.c.b16 %v1476, %v1474
    %v1525 = vpack.c.b16 %v1479, %v1477
    %v1526 = vpack.c.b16 %v1480, %v1478
    %v1527 = vpack.c.b16 %v1483, %v1481
    %v1528 = vpack.c.b16 %v1484, %v1482
    %v1529 = vpack.c.b16 %v1487, %v1485
    %v1530 = vpack.c.b16 %v1488, %v1486
    %v1531 = vpack.c.b16 %v1491, %v1489
    %v1532 = vpack.c.b16 %v1492, %v1490
    %v1533 = vpack.c.b16 %v1495, %v1493
    %v1534 = vpack.c.b16 %v1496, %v1494
    %v1535 = vpack.c.b16 %v1499, %v1497
    %v1536 = vpack.c.b16 %v1500, %v1498
    %v1537 = vpack.c.b16 %v1503, %v1501
    %v1538 = vpack.c.b16 %v1504, %v1502
    %v1539 = vpack.c.b16 %v1507, %v1505
    %v1540 = vpack.c.b16 %v1508, %v1506
    %1573 = vmatprep.subr.bf16.mxu0 %v1510
    %1574 = vmatpush1.bf16.msra.mxu0 %v1509
    %1575 = vmatprep.subr.bf16.mxu0 %v1512
    %1576 = vmatpush1.bf16.msra.mxu0 %v1511
    %1577 = vmatprep.subr.bf16.mxu0 %v1514
    %1578 = vmatpush1.bf16.msra.mxu0 %v1513
    %1579 = vmatprep.subr.bf16.mxu0 %v1516
    %1580 = vmatpush1.bf16.msra.mxu0 %v1515
    %1581 = vmatprep.subr.bf16.mxu0 %v1518
    %1582 = vmatpush1.bf16.msra.mxu0 %v1517
    %1583 = vmatprep.subr.bf16.mxu0 %v1520
    %1584 = vmatpush1.bf16.msra.mxu0 %v1519
    %1585 = vmatprep.subr.bf16.mxu0 %v1522
    %1586 = vmatpush1.bf16.msra.mxu0 %v1521
    %1587 = vmatprep.subr.bf16.mxu0 %v1524
    %1588 = vmatpush1.bf16.msra.mxu0 %v1523
    %1589 = vmatprep.subr.bf16.mxu0 %v1526
    %1590 = vmatpush1.bf16.msra.mxu0 %v1525
    %1591 = vmatprep.subr.bf16.mxu0 %v1528
    %1592 = vmatpush1.bf16.msra.mxu0 %v1527
    %1593 = vmatprep.subr.bf16.mxu0 %v1530
    %1594 = vmatpush1.bf16.msra.mxu0 %v1529
    %1595 = vmatprep.subr.bf16.mxu0 %v1532
    %1596 = vmatpush1.bf16.msra.mxu0 %v1531
    %1597 = vmatprep.subr.bf16.mxu0 %v1534
    %1598 = vmatpush1.bf16.msra.mxu0 %v1533
    %1599 = vmatprep.subr.bf16.mxu0 %v1536
    %1600 = vmatpush1.bf16.msra.mxu0 %v1535
    %1601 = vmatprep.subr.bf16.mxu0 %v1538
    %1602 = vmatpush1.bf16.msra.mxu0 %v1537
    %1603 = vmatprep.subr.bf16.mxu0 %v1540
    %1604 = vmatpush1.bf16.msra.mxu0 %v1539
    %1605 = vmatprep.mubr.bf16.mxu0 %v1332
    %1606 = vmatmul.mubr.bf16.gmra.mrb[0].mxu0 %v1331
    %v1607 = vpop.f32.mrb[0].mxu0
    %v1608 = vadd.f32 %v1406, %v1607
    %v1609 = vpop.f32.mrb[0].mxu0
    %v1610 = vadd.f32 %v1410, %v1609
    %v1611 = vpop.f32.mrb[0].mxu0
    %v1612 = vadd.f32 %v1406, %v1611
    %v1613 = vpop.f32.mrb[0].mxu0
    %v1614 = vadd.f32 %v1410, %v1613
    %1615 = vmatprep.mubr.bf16.mxu0 %v1334
    %1616 = vmatmul.mubr.bf16.gmra.mrb[0].mxu0 %v1333
    %v1617 = vpop.f32.mrb[0].mxu0
    %v1618 = vadd.f32 %v1406, %v1617
    %v1619 = vpop.f32.mrb[0].mxu0
    %v1620 = vadd.f32 %v1410, %v1619
    %v1621 = vpop.f32.mrb[0].mxu0
    %v1622 = vadd.f32 %v1406, %v1621
    %v1623 = vpop.f32.mrb[0].mxu0
    %v1624 = vadd.f32 %v1410, %v1623
    %1625 = vmatprep.mubr.bf16.mxu0 %v1336
    %1626 = vmatmul.mubr.bf16.gmra.mrb[0].mxu0 %v1335
    %v1627 = vpop.f32.mrb[0].mxu0
    %v1628 = vadd.f32 %v1406, %v1627
    %v1629 = vpop.f32.mrb[0].mxu0
    %v1630 = vadd.f32 %v1410, %v1629
    %v1631 = vpop.f32.mrb[0].mxu0
    %v1632 = vadd.f32 %v1406, %v1631
    %v1633 = vpop.f32.mrb[0].mxu0
    %v1634 = vadd.f32 %v1410, %v1633
    %1635 = vmatprep.mubr.bf16.mxu0 %v1338
    %1636 = vmatmul.mubr.bf16.gmra.mrb[0].mxu0 %v1337
    %v1637 = vpop.f32.mrb[0].mxu0
    %v1638 = vadd.f32 %v1406, %v1637
    %v1639 = vpop.f32.mrb[0].mxu0
    %v1640 = vadd.f32 %v1410, %v1639
    %v1641 = vpop.f32.mrb[0].mxu0
    %v1642 = vadd.f32 %v1406, %v1641
    %v1643 = vpop.f32.mrb[0].mxu0
    %v1644 = vadd.f32 %v1410, %v1643
    %1645 = vmatprep.mubr.bf16.mxu0 %v1340
    %1646 = vmatmul.mubr.bf16.gmra.mrb[0].mxu0 %v1339
    %v1647 = vpop.f32.mrb[0].mxu0
    %v1648 = vadd.f32 %v1406, %v1647
    %v1649 = vpop.f32.mrb[0].mxu0
    %v1650 = vadd.f32 %v1410, %v1649
    %v1651 = vpop.f32.mrb[0].mxu0
    %v1652 = vadd.f32 %v1406, %v1651
    %v1653 = vpop.f32.mrb[0].mxu0
    %v1654 = vadd.f32 %v1410, %v1653
    %1655 = vmatprep.mubr.bf16.mxu0 %v1342
    %1656 = vmatmul.mubr.bf16.gmra.mrb[0].mxu0 %v1341
    %v1657 = vpop.f32.mrb[0].mxu0
    %v1658 = vadd.f32 %v1406, %v1657
    %v1659 = vpop.f32.mrb[0].mxu0
    %v1660 = vadd.f32 %v1410, %v1659
    %v1661 = vpop.f32.mrb[0].mxu0
    %v1662 = vadd.f32 %v1406, %v1661
    %v1663 = vpop.f32.mrb[0].mxu0
    %v1664 = vadd.f32 %v1410, %v1663
    %1665 = vmatprep.mubr.bf16.mxu0 %v1344
    %1666 = vmatmul.mubr.bf16.gmra.mrb[0].mxu0 %v1343
    %v1667 = vpop.f32.mrb[0].mxu0
    %v1668 = vadd.f32 %v1406, %v1667
    %v1669 = vpop.f32.mrb[0].mxu0
    %v1670 = vadd.f32 %v1410, %v1669
    %v1671 = vpop.f32.mrb[0].mxu0
    %v1672 = vadd.f32 %v1406, %v1671
    %v1673 = vpop.f32.mrb[0].mxu0
    %v1674 = vadd.f32 %v1410, %v1673
    %1675 = vmatprep.mubr.bf16.mxu0 %v1346
    %1676 = vmatmul.mubr.bf16.gmra.mrb[0].mxu0 %v1345
    %v1677 = vpop.f32.mrb[0].mxu0
    %v1678 = vadd.f32 %v1406, %v1677
    %v1679 = vpop.f32.mrb[0].mxu0
    %v1680 = vadd.f32 %v1410, %v1679
    %v1681 = vpop.f32.mrb[0].mxu0
    %v1682 = vadd.f32 %v1406, %v1681
    %v1683 = vpop.f32.mrb[0].mxu0
    %v1684 = vadd.f32 %v1410, %v1683
    %1685 = vmatprep.mubr.bf16.mxu0 %v1348
    %1686 = vmatmul.mubr.bf16.gmra.mrb[0].mxu0 %v1347
    %v1687 = vpop.f32.mrb[0].mxu0
    %v1688 = vadd.f32 %v1406, %v1687
    %v1689 = vpop.f32.mrb[0].mxu0
    %v1690 = vadd.f32 %v1410, %v1689
    %v1691 = vpop.f32.mrb[0].mxu0
    %v1692 = vadd.f32 %v1406, %v1691
    %v1693 = vpop.f32.mrb[0].mxu0
    %v1694 = vadd.f32 %v1410, %v1693
    %1695 = vmatprep.mubr.bf16.mxu0 %v1350
    %1696 = vmatmul.mubr.bf16.gmra.mrb[0].mxu0 %v1349
    %v1697 = vpop.f32.mrb[0].mxu0
    %v1698 = vadd.f32 %v1406, %v1697
    %v1699 = vpop.f32.mrb[0].mxu0
    %v1700 = vadd.f32 %v1410, %v1699
    %v1701 = vpop.f32.mrb[0].mxu0
    %v1702 = vadd.f32 %v1406, %v1701
    %v1703 = vpop.f32.mrb[0].mxu0
    %v1704 = vadd.f32 %v1410, %v1703
    %1705 = vmatprep.mubr.bf16.mxu0 %v1352
    %1706 = vmatmul.mubr.bf16.gmra.mrb[0].mxu0 %v1351
    %v1707 = vpop.f32.mrb[0].mxu0
    %v1708 = vadd.f32 %v1406, %v1707
    %v1709 = vpop.f32.mrb[0].mxu0
    %v1710 = vadd.f32 %v1410, %v1709
    %v1711 = vpop.f32.mrb[0].mxu0
    %v1712 = vadd.f32 %v1406, %v1711
    %v1713 = vpop.f32.mrb[0].mxu0
    %v1714 = vadd.f32 %v1410, %v1713
    %1715 = vmatprep.mubr.bf16.mxu0 %v1354
    %1716 = vmatmul.mubr.bf16.gmra.mrb[0].mxu0 %v1353
    %v1717 = vpop.f32.mrb[0].mxu0
    %v1718 = vadd.f32 %v1406, %v1717
    %v1719 = vpop.f32.mrb[0].mxu0
    %v1720 = vadd.f32 %v1410, %v1719
    %v1721 = vpop.f32.mrb[0].mxu0
    %v1722 = vadd.f32 %v1406, %v1721
    %v1723 = vpop.f32.mrb[0].mxu0
    %v1724 = vadd.f32 %v1410, %v1723
    %1725 = vmatprep.mubr.bf16.mxu0 %v1356
    %1726 = vmatmul.mubr.bf16.gmra.mrb[0].mxu0 %v1355
    %v1727 = vpop.f32.mrb[0].mxu0
    %v1728 = vadd.f32 %v1406, %v1727
    %v1729 = vpop.f32.mrb[0].mxu0
    %v1730 = vadd.f32 %v1410, %v1729
    %v1731 = vpop.f32.mrb[0].mxu0
    %v1732 = vadd.f32 %v1406, %v1731
    %v1733 = vpop.f32.mrb[0].mxu0
    %v1734 = vadd.f32 %v1410, %v1733
    %1735 = vmatprep.mubr.bf16.mxu0 %v1358
    %1736 = vmatmul.mubr.bf16.gmra.mrb[0].mxu0 %v1357
    %v1737 = vpop.f32.mrb[0].mxu0
    %v1738 = vadd.f32 %v1406, %v1737
    %v1739 = vpop.f32.mrb[0].mxu0
    %v1740 = vadd.f32 %v1410, %v1739
    %v1741 = vpop.f32.mrb[0].mxu0
    %v1742 = vadd.f32 %v1406, %v1741
    %v1743 = vpop.f32.mrb[0].mxu0
    %v1744 = vadd.f32 %v1410, %v1743
    %1745 = vmatprep.mubr.bf16.mxu0 %v1360
    %1746 = vmatmul.mubr.bf16.gmra.mrb[0].mxu0 %v1359
    %v1747 = vpop.f32.mrb[0].mxu0
    %v1748 = vadd.f32 %v1406, %v1747
    %v1749 = vpop.f32.mrb[0].mxu0
    %v1750 = vadd.f32 %v1410, %v1749
    %v1751 = vpop.f32.mrb[0].mxu0
    %v1752 = vadd.f32 %v1406, %v1751
    %v1753 = vpop.f32.mrb[0].mxu0
    %v1754 = vadd.f32 %v1410, %v1753
    %1755 = vmatprep.mubr.bf16.mxu0 %v1362
    %1756 = vmatmul.mubr.bf16.gmra.mrb[0].mxu0 %v1361
    %v1757 = vpop.f32.mrb[0].mxu0
    %v1758 = vadd.f32 %v1406, %v1757
    %v1759 = vpop.f32.mrb[0].mxu0
    %v1760 = vadd.f32 %v1410, %v1759
    %v1761 = vpop.f32.mrb[0].mxu0
    %v1762 = vadd.f32 %v1406, %v1761
    %v1763 = vpop.f32.mrb[0].mxu0
    %v1764 = vadd.f32 %v1410, %v1763
    %1765 = vmatprep.mubr.bf16.mxu0 %v1364
    %1766 = vmatmul.mubr.bf16.gmra.mrb[0].mxu0 %v1363
    %v1767 = vpop.f32.mrb[0].mxu0
    %v1768 = vadd.f32 %v1406, %v1767
    %v1769 = vpop.f32.mrb[0].mxu0
    %v1770 = vadd.f32 %v1410, %v1769
    %v1771 = vpop.f32.mrb[0].mxu0
    %v1772 = vadd.f32 %v1406, %v1771
    %v1773 = vpop.f32.mrb[0].mxu0
    %v1774 = vadd.f32 %v1410, %v1773
    %1775 = vmatprep.mubr.bf16.mxu0 %v1366
    %1776 = vmatmul.mubr.bf16.gmra.mrb[0].mxu0 %v1365
    %v1777 = vpop.f32.mrb[0].mxu0
    %v1778 = vadd.f32 %v1406, %v1777
    %v1779 = vpop.f32.mrb[0].mxu0
    %v1780 = vadd.f32 %v1410, %v1779
    %v1781 = vpop.f32.mrb[0].mxu0
    %v1782 = vadd.f32 %v1406, %v1781
    %v1783 = vpop.f32.mrb[0].mxu0
    %v1784 = vadd.f32 %v1410, %v1783
    %1785 = vmatprep.mubr.bf16.mxu0 %v1368
    %1786 = vmatmul.mubr.bf16.gmra.mrb[0].mxu0 %v1367
    %v1787 = vpop.f32.mrb[0].mxu0
    %v1788 = vadd.f32 %v1406, %v1787
    %v1789 = vpop.f32.mrb[0].mxu0
    %v1790 = vadd.f32 %v1410, %v1789
    %v1791 = vpop.f32.mrb[0].mxu0
    %v1792 = vadd.f32 %v1406, %v1791
    %v1793 = vpop.f32.mrb[0].mxu0
    %v1794 = vadd.f32 %v1410, %v1793
    %1795 = vdwg.mxu0
    %vm1796 = vcmp.gt.f32.partialorder %v1608, 0.0
    %vm1797 = vcmp.gt.f32.partialorder %v1610, 0.0
    %vm1798 = vcmp.gt.f32.partialorder %v1612, 0.0
    %vm1799 = vcmp.gt.f32.partialorder %v1614, 0.0
    %vm1800 = vcmp.gt.f32.partialorder %v1618, 0.0
    %vm1801 = vcmp.gt.f32.partialorder %v1620, 0.0
    %vm1802 = vcmp.gt.f32.partialorder %v1622, 0.0
    %vm1803 = vcmp.gt.f32.partialorder %v1624, 0.0
    %vm1804 = vcmp.gt.f32.partialorder %v1628, 0.0
    %vm1805 = vcmp.gt.f32.partialorder %v1630, 0.0
    %vm1806 = vcmp.gt.f32.partialorder %v1632, 0.0
    %vm1807 = vcmp.gt.f32.partialorder %v1634, 0.0
    %vm1808 = vcmp.gt.f32.partialorder %v1638, 0.0
    %vm1809 = vcmp.gt.f32.partialorder %v1640, 0.0
    %vm1810 = vcmp.gt.f32.partialorder %v1642, 0.0
    %vm1811 = vcmp.gt.f32.partialorder %v1644, 0.0
    %vm1812 = vcmp.gt.f32.partialorder %v1648, 0.0
    %vm1813 = vcmp.gt.f32.partialorder %v1650, 0.0
    %vm1814 = vcmp.gt.f32.partialorder %v1652, 0.0
    %vm1815 = vcmp.gt.f32.partialorder %v1654, 0.0
    %vm1816 = vcmp.gt.f32.partialorder %v1658, 0.0
    %vm1817 = vcmp.gt.f32.partialorder %v1660, 0.0
    %vm1818 = vcmp.gt.f32.partialorder %v1662, 0.0
    %vm1819 = vcmp.gt.f32.partialorder %v1664, 0.0
    %vm1820 = vcmp.gt.f32.partialorder %v1668, 0.0
    %vm1821 = vcmp.gt.f32.partialorder %v1670, 0.0
    %vm1822 = vcmp.gt.f32.partialorder %v1672, 0.0
    %vm1823 = vcmp.gt.f32.partialorder %v1674, 0.0
    %vm1824 = vcmp.gt.f32.partialorder %v1678, 0.0
    %vm1825 = vcmp.gt.f32.partialorder %v1680, 0.0
    %vm1826 = vcmp.gt.f32.partialorder %v1682, 0.0
    %vm1827 = vcmp.gt.f32.partialorder %v1684, 0.0
    %vm1828 = vcmp.gt.f32.partialorder %v1688, 0.0
    %vm1829 = vcmp.gt.f32.partialorder %v1690, 0.0
    %vm1830 = vcmp.gt.f32.partialorder %v1692, 0.0
    %vm1831 = vcmp.gt.f32.partialorder %v1694, 0.0
    %vm1832 = vcmp.gt.f32.partialorder %v1698, 0.0
    %vm1833 = vcmp.gt.f32.partialorder %v1700, 0.0
    %vm1834 = vcmp.gt.f32.partialorder %v1702, 0.0
    %vm1835 = vcmp.gt.f32.partialorder %v1704, 0.0
    %vm1836 = vcmp.gt.f32.partialorder %v1708, 0.0
    %vm1837 = vcmp.gt.f32.partialorder %v1710, 0.0
    %vm1838 = vcmp.gt.f32.partialorder %v1712, 0.0
    %vm1839 = vcmp.gt.f32.partialorder %v1714, 0.0
    %vm1840 = vcmp.gt.f32.partialorder %v1718, 0.0
    %vm1841 = vcmp.gt.f32.partialorder %v1720, 0.0
    %vm1842 = vcmp.gt.f32.partialorder %v1722, 0.0
    %vm1843 = vcmp.gt.f32.partialorder %v1724, 0.0
    %vm1844 = vcmp.gt.f32.partialorder %v1728, 0.0
    %vm1845 = vcmp.gt.f32.partialorder %v1730, 0.0
    %vm1846 = vcmp.gt.f32.partialorder %v1732, 0.0
    %vm1847 = vcmp.gt.f32.partialorder %v1734, 0.0
    %vm1848 = vcmp.gt.f32.partialorder %v1738, 0.0
    %vm1849 = vcmp.gt.f32.partialorder %v1740, 0.0
    %vm1850 = vcmp.gt.f32.partialorder %v1742, 0.0
    %vm1851 = vcmp.gt.f32.partialorder %v1744, 0.0
    %vm1852 = vcmp.gt.f32.partialorder %v1748, 0.0
    %vm1853 = vcmp.gt.f32.partialorder %v1750, 0.0
    %vm1854 = vcmp.gt.f32.partialorder %v1752, 0.0
    %vm1855 = vcmp.gt.f32.partialorder %v1754, 0.0
    %vm1856 = vcmp.gt.f32.partialorder %v1758, 0.0
    %vm1857 = vcmp.gt.f32.partialorder %v1760, 0.0
    %vm1858 = vcmp.gt.f32.partialorder %v1762, 0.0
    %vm1859 = vcmp.gt.f32.partialorder %v1764, 0.0
    %vm1860 = vcmp.gt.f32.partialorder %v1768, 0.0
    %vm1861 = vcmp.gt.f32.partialorder %v1770, 0.0
    %vm1862 = vcmp.gt.f32.partialorder %v1772, 0.0
    %vm1863 = vcmp.gt.f32.partialorder %v1774, 0.0
    %vm1864 = vcmp.gt.f32.partialorder %v1778, 0.0
    %vm1865 = vcmp.gt.f32.partialorder %v1780, 0.0
    %vm1866 = vcmp.gt.f32.partialorder %v1782, 0.0
    %vm1867 = vcmp.gt.f32.partialorder %v1784, 0.0
    %vm1868 = vcmp.gt.f32.partialorder %v1788, 0.0
    %vm1869 = vcmp.gt.f32.partialorder %v1790, 0.0
    %vm1870 = vcmp.gt.f32.partialorder %v1792, 0.0
    %vm1871 = vcmp.gt.f32.partialorder %v1794, 0.0
    %v1872 = vmul.f32 %v1608, 0.1
    %v1873 = vmul.f32 %v1610, 0.1
    %v1874 = vmul.f32 %v1612, 0.1
    %v1875 = vmul.f32 %v1614, 0.1
    %v1876 = vmul.f32 %v1618, 0.1
    %v1877 = vmul.f32 %v1620, 0.1
    %v1878 = vmul.f32 %v1622, 0.1
    %v1879 = vmul.f32 %v1624, 0.1
    %v1880 = vmul.f32 %v1628, 0.1
    %v1881 = vmul.f32 %v1630, 0.1
    %v1882 = vmul.f32 %v1632, 0.1
    %v1883 = vmul.f32 %v1634, 0.1
    %v1884 = vmul.f32 %v1638, 0.1
    %v1885 = vmul.f32 %v1640, 0.1
    %v1886 = vmul.f32 %v1642, 0.1
    %v1887 = vmul.f32 %v1644, 0.1
    %v1888 = vmul.f32 %v1648, 0.1
    %v1889 = vmul.f32 %v1650, 0.1
    %v1890 = vmul.f32 %v1652, 0.1
    %v1891 = vmul.f32 %v1654, 0.1
    %v1892 = vmul.f32 %v1658, 0.1
    %v1893 = vmul.f32 %v1660, 0.1
    %v1894 = vmul.f32 %v1662, 0.1
    %v1895 = vmul.f32 %v1664, 0.1
    %v1896 = vmul.f32 %v1668, 0.1
    %v1897 = vmul.f32 %v1670, 0.1
    %v1898 = vmul.f32 %v1672, 0.1
    %v1899 = vmul.f32 %v1674, 0.1
    %v1900 = vmul.f32 %v1678, 0.1
    %v1901 = vmul.f32 %v1680, 0.1
    %v1902 = vmul.f32 %v1682, 0.1
    %v1903 = vmul.f32 %v1684, 0.1
    %v1904 = vmul.f32 %v1688, 0.1
    %v1905 = vmul.f32 %v1690, 0.1
    %v1906 = vmul.f32 %v1692, 0.1
    %v1907 = vmul.f32 %v1694, 0.1
    %v1908 = vmul.f32 %v1698, 0.1
    %v1909 = vmul.f32 %v1700, 0.1
    %v1910 = vmul.f32 %v1702, 0.1
    %v1911 = vmul.f32 %v1704, 0.1
    %v1912 = vmul.f32 %v1708, 0.1
    %v1913 = vmul.f32 %v1710, 0.1
    %v1914 = vmul.f32 %v1712, 0.1
    %v1915 = vmul.f32 %v1714, 0.1
    %v1916 = vmul.f32 %v1718, 0.1
    %v1917 = vmul.f32 %v1720, 0.1
    %v1918 = vmul.f32 %v1722, 0.1
    %v1919 = vmul.f32 %v1724, 0.1
    %v1920 = vmul.f32 %v1728, 0.1
    %v1921 = vmul.f32 %v1730, 0.1
    %v1922 = vmul.f32 %v1732, 0.1
    %v1923 = vmul.f32 %v1734, 0.1
    %v1924 = vmul.f32 %v1738, 0.1
    %v1925 = vmul.f32 %v1740, 0.1
    %v1926 = vmul.f32 %v1742, 0.1
    %v1927 = vmul.f32 %v1744, 0.1
    %v1928 = vmul.f32 %v1748, 0.1
    %v1929 = vmul.f32 %v1750, 0.1
    %v1930 = vmul.f32 %v1752, 0.1
    %v1931 = vmul.f32 %v1754, 0.1
    %v1932 = vmul.f32 %v1758, 0.1
    %v1933 = vmul.f32 %v1760, 0.1
    %v1934 = vmul.f32 %v1762, 0.1
    %v1935 = vmul.f32 %v1764, 0.1
    %v1936 = vmul.f32 %v1768, 0.1
    %v1937 = vmul.f32 %v1770, 0.1
    %v1938 = vmul.f32 %v1772, 0.1
    %v1939 = vmul.f32 %v1774, 0.1
    %v1940 = vmul.f32 %v1778, 0.1
    %v1941 = vmul.f32 %v1780, 0.1
    %v1942 = vmul.f32 %v1782, 0.1
    %v1943 = vmul.f32 %v1784, 0.1
    %v1944 = vmul.f32 %v1788, 0.1
    %v1945 = vmul.f32 %v1790, 0.1
    %v1946 = vmul.f32 %v1792, 0.1
    %v1947 = vmul.f32 %v1794, 0.1
    %v1948 = vsel %vm1796, %v1608, %v1872
    %v1949 = vsel %vm1797, %v1610, %v1873
    %v1950 = vsel %vm1798, %v1612, %v1874
    %v1951 = vsel %vm1799, %v1614, %v1875
    %v1952 = vsel %vm1800, %v1618, %v1876
    %v1953 = vsel %vm1801, %v1620, %v1877
    %v1954 = vsel %vm1802, %v1622, %v1878
    %v1955 = vsel %vm1803, %v1624, %v1879
    %v1956 = vsel %vm1804, %v1628, %v1880
    %v1957 = vsel %vm1805, %v1630, %v1881
    %v1958 = vsel %vm1806, %v1632, %v1882
    %v1959 = vsel %vm1807, %v1634, %v1883
    %v1960 = vsel %vm1808, %v1638, %v1884
    %v1961 = vsel %vm1809, %v1640, %v1885
    %v1962 = vsel %vm1810, %v1642, %v1886
    %v1963 = vsel %vm1811, %v1644, %v1887
    %v1964 = vsel %vm1812, %v1648, %v1888
    %v1965 = vsel %vm1813, %v1650, %v1889
    %v1966 = vsel %vm1814, %v1652, %v1890
    %v1967 = vsel %vm1815, %v1654, %v1891
    %v1968 = vsel %vm1816, %v1658, %v1892
    %v1969 = vsel %vm1817, %v1660, %v1893
    %v1970 = vsel %vm1818, %v1662, %v1894
    %v1971 = vsel %vm1819, %v1664, %v1895
    %v1972 = vsel %vm1820, %v1668, %v1896
    %v1973 = vsel %vm1821, %v1670, %v1897
    %v1974 = vsel %vm1822, %v1672, %v1898
    %v1975 = vsel %vm1823, %v1674, %v1899
    %v1976 = vsel %vm1824, %v1678, %v1900
    %v1977 = vsel %vm1825, %v1680, %v1901
    %v1978 = vsel %vm1826, %v1682, %v1902
    %v1979 = vsel %vm1827, %v1684, %v1903
    %v1980 = vsel %vm1828, %v1688, %v1904
    %v1981 = vsel %vm1829, %v1690, %v1905
    %v1982 = vsel %vm1830, %v1692, %v1906
    %v1983 = vsel %vm1831, %v1694, %v1907
    %v1984 = vsel %vm1832, %v1698, %v1908
    %v1985 = vsel %vm1833, %v1700, %v1909
    %v1986 = vsel %vm1834, %v1702, %v1910
    %v1987 = vsel %vm1835, %v1704, %v1911
    %v1988 = vsel %vm1836, %v1708, %v1912
    %v1989 = vsel %vm1837, %v1710, %v1913
    %v1990 = vsel %vm1838, %v1712, %v1914
    %v1991 = vsel %vm1839, %v1714, %v1915
    %v1992 = vsel %vm1840, %v1718, %v1916
    %v1993 = vsel %vm1841, %v1720, %v1917
    %v1994 = vsel %vm1842, %v1722, %v1918
    %v1995 = vsel %vm1843, %v1724, %v1919
    %v1996 = vsel %vm1844, %v1728, %v1920
    %v1997 = vsel %vm1845, %v1730, %v1921
    %v1998 = vsel %vm1846, %v1732, %v1922
    %v1999 = vsel %vm1847, %v1734, %v1923
    %v2000 = vsel %vm1848, %v1738, %v1924
    %v2001 = vsel %vm1849, %v1740, %v1925
    %v2002 = vsel %vm1850, %v1742, %v1926
    %v2003 = vsel %vm1851, %v1744, %v1927
    %v2004 = vsel %vm1852, %v1748, %v1928
    %v2005 = vsel %vm1853, %v1750, %v1929
    %v2006 = vsel %vm1854, %v1752, %v1930
    %v2007 = vsel %vm1855, %v1754, %v1931
    %v2008 = vsel %vm1856, %v1758, %v1932
    %v2009 = vsel %vm1857, %v1760, %v1933
    %v2010 = vsel %vm1858, %v1762, %v1934
    %v2011 = vsel %vm1859, %v1764, %v1935
    %v2012 = vsel %vm1860, %v1768, %v1936
    %v2013 = vsel %vm1861, %v1770, %v1937
    %v2014 = vsel %vm1862, %v1772, %v1938
    %v2015 = vsel %vm1863, %v1774, %v1939
    %v2016 = vsel %vm1864, %v1778, %v1940
    %v2017 = vsel %vm1865, %v1780, %v1941
    %v2018 = vsel %vm1866, %v1782, %v1942
    %v2019 = vsel %vm1867, %v1784, %v1943
    %v2020 = vsel %vm1868, %v1788, %v1944
    %v2021 = vsel %vm1869, %v1790, %v1945
    %v2022 = vsel %vm1870, %v1792, %v1946
    %v2023 = vsel %vm1871, %v1794, %v1947
    %v2024 = vpack.c.bf16 %v1950, %v1948
    %v2025 = vpack.c.bf16 %v1951, %v1949
    %v2026 = vpack.c.bf16 %v1954, %v1952
    %v2027 = vpack.c.bf16 %v1955, %v1953
    %v2028 = vpack.c.bf16 %v1958, %v1956
    %v2029 = vpack.c.bf16 %v1959, %v1957
    %v2030 = vpack.c.bf16 %v1962, %v1960
    %v2031 = vpack.c.bf16 %v1963, %v1961
    %v2032 = vpack.c.bf16 %v1966, %v1964
    %v2033 = vpack.c.bf16 %v1967, %v1965
    %v2034 = vpack.c.bf16 %v1970, %v1968
    %v2035 = vpack.c.bf16 %v1971, %v1969
    %v2036 = vpack.c.bf16 %v1974, %v1972
    %v2037 = vpack.c.bf16 %v1975, %v1973
    %v2038 = vpack.c.bf16 %v1978, %v1976
    %v2039 = vpack.c.bf16 %v1979, %v1977
    %v2040 = vpack.c.bf16 %v1982, %v1980
    %v2041 = vpack.c.bf16 %v1983, %v1981
    %v2042 = vpack.c.bf16 %v1986, %v1984
    %v2043 = vpack.c.bf16 %v1987, %v1985
    %v2044 = vpack.c.bf16 %v1990, %v1988
    %v2045 = vpack.c.bf16 %v1991, %v1989
    %v2046 = vpack.c.bf16 %v1994, %v1992
    %v2047 = vpack.c.bf16 %v1995, %v1993
    %v2048 = vpack.c.bf16 %v1998, %v1996
    %v2049 = vpack.c.bf16 %v1999, %v1997
    %v2050 = vpack.c.bf16 %v2002, %v2000
    %v2051 = vpack.c.bf16 %v2003, %v2001
    %v2052 = vpack.c.bf16 %v2006, %v2004
    %v2053 = vpack.c.bf16 %v2007, %v2005
    %v2054 = vpack.c.bf16 %v2010, %v2008
    %v2055 = vpack.c.bf16 %v2011, %v2009
    %v2056 = vpack.c.bf16 %v2014, %v2012
    %v2057 = vpack.c.bf16 %v2015, %v2013
    %v2058 = vpack.c.bf16 %v2018, %v2016
    %v2059 = vpack.c.bf16 %v2019, %v2017
    %v2060 = vpack.c.bf16 %v2022, %v2020
    %v2061 = vpack.c.bf16 %v2023, %v2021
    %v2100 = vunpack.c.l.b16 %v2024
    %v2101 = vunpack.c.l.b16 %v2025
    %v2102 = vunpack.c.h.b16 %v2024
    %v2103 = vunpack.c.h.b16 %v2025
    %v2104 = vunpack.c.l.b16 %v2026
    %v2105 = vunpack.c.l.b16 %v2027
    %v2106 = vunpack.c.h.b16 %v2026
    %v2107 = vunpack.c.h.b16 %v2027
    %v2108 = vunpack.c.l.b16 %v2028
    %v2109 = vunpack.c.l.b16 %v2029
    %v2110 = vunpack.c.h.b16 %v2028
    %v2111 = vunpack.c.h.b16 %v2029
    %v2112 = vunpack.c.l.b16 %v2030
    %v2113 = vunpack.c.l.b16 %v2031
    %v2114 = vunpack.c.h.b16 %v2030
    %v2115 = vunpack.c.h.b16 %v2031
    %v2116 = vunpack.c.l.b16 %v2032
    %v2117 = vunpack.c.l.b16 %v2033
    %v2118 = vunpack.c.h.b16 %v2032
    %v2119 = vunpack.c.h.b16 %v2033
    %v2120 = vunpack.c.l.b16 %v2034
    %v2121 = vunpack.c.l.b16 %v2035
    %v2122 = vunpack.c.h.b16 %v2034
    %v2123 = vunpack.c.h.b16 %v2035
    %v2124 = vunpack.c.l.b16 %v2036
    %v2125 = vunpack.c.l.b16 %v2037
    %v2126 = vunpack.c.h.b16 %v2036
    %v2127 = vunpack.c.h.b16 %v2037
    %v2128 = vunpack.c.l.b16 %v2038
    %v2129 = vunpack.c.l.b16 %v2039
    %v2130 = vunpack.c.h.b16 %v2038
    %v2131 = vunpack.c.h.b16 %v2039
    %v2132 = vunpack.c.l.b16 %v2040
    %v2133 = vunpack.c.l.b16 %v2041
    %v2134 = vunpack.c.h.b16 %v2040
    %v2135 = vunpack.c.h.b16 %v2041
    %v2136 = vunpack.c.l.b16 %v2042
    %v2137 = vunpack.c.l.b16 %v2043
    %v2138 = vunpack.c.h.b16 %v2042
    %v2139 = vunpack.c.h.b16 %v2043
    %v2140 = vunpack.c.l.b16 %v2044
    %v2141 = vunpack.c.l.b16 %v2045
    %v2142 = vunpack.c.h.b16 %v2044
    %v2143 = vunpack.c.h.b16 %v2045
    %v2144 = vunpack.c.l.b16 %v2046
    %v2145 = vunpack.c.l.b16 %v2047
    %v2146 = vunpack.c.h.b16 %v2046
    %v2147 = vunpack.c.h.b16 %v2047
    %v2148 = vunpack.c.l.b16 %v2048
    %v2149 = vunpack.c.l.b16 %v2049
    %v2150 = vunpack.c.h.b16 %v2048
    %v2151 = vunpack.c.h.b16 %v2049
    %v2152 = vunpack.c.l.b16 %v2050
    %v2153 = vunpack.c.l.b16 %v2051
    %v2154 = vunpack.c.h.b16 %v2050
    %v2155 = vunpack.c.h.b16 %v2051
    %v2156 = vunpack.c.l.b16 %v2052
    %v2157 = vunpack.c.l.b16 %v2053
    %v2158 = vunpack.c.h.b16 %v2052
    %v2159 = vunpack.c.h.b16 %v2053
    %v2160 = vunpack.c.l.b16 %v2054
    %v2161 = vunpack.c.l.b16 %v2055
    %v2162 = vunpack.c.h.b16 %v2054
    %v2163 = vunpack.c.h.b16 %v2055
    %v2164 = vunpack.c.l.b16 %v2056
    %v2165 = vunpack.c.l.b16 %v2057
    %v2166 = vunpack.c.h.b16 %v2056
    %v2167 = vunpack.c.h.b16 %v2057
    %v2168 = vunpack.c.l.b16 %v2058
    %v2169 = vunpack.c.l.b16 %v2059
    %v2170 = vunpack.c.h.b16 %v2058
    %v2171 = vunpack.c.h.b16 %v2059
    %v2172 = vunpack.c.l.b16 %v2060
    %v2173 = vunpack.c.l.b16 %v2061
    %v2174 = vunpack.c.h.b16 %v2060
    %v2175 = vunpack.c.h.b16 %v2061
    %v2176 = vpack.c.b16 %v2101, %v2100
    %v2177 = vpack.c.b16 %v2103, %v2102
    %v2178 = vpack.c.b16 %v2105, %v2104
    %v2179 = vpack.c.b16 %v2107, %v2106
    %v2180 = vpack.c.b16 %v2109, %v2108
    %v2181 = vpack.c.b16 %v2111, %v2110
    %v2182 = vpack.c.b16 %v2113, %v2112
    %v2183 = vpack.c.b16 %v2115, %v2114
    %v2184 = vpack.c.b16 %v2117, %v2116
    %v2185 = vpack.c.b16 %v2119, %v2118
    %v2186 = vpack.c.b16 %v2121, %v2120
    %v2187 = vpack.c.b16 %v2123, %v2122
    %v2188 = vpack.c.b16 %v2125, %v2124
    %v2189 = vpack.c.b16 %v2127, %v2126
    %v2190 = vpack.c.b16 %v2129, %v2128
    %v2191 = vpack.c.b16 %v2131, %v2130
    %v2192 = vpack.c.b16 %v2133, %v2132
    %v2193 = vpack.c.b16 %v2135, %v2134
    %v2194 = vpack.c.b16 %v2137, %v2136
    %v2195 = vpack.c.b16 %v2139, %v2138
    %v2196 = vpack.c.b16 %v2141, %v2140
    %v2197 = vpack.c.b16 %v2143, %v2142
    %v2198 = vpack.c.b16 %v2145, %v2144
    %v2199 = vpack.c.b16 %v2147, %v2146
    %v2200 = vpack.c.b16 %v2149, %v2148
    %v2201 = vpack.c.b16 %v2151, %v2150
    %v2202 = vpack.c.b16 %v2153, %v2152
    %v2203 = vpack.c.b16 %v2155, %v2154
    %v2204 = vpack.c.b16 %v2157, %v2156
    %v2205 = vpack.c.b16 %v2159, %v2158
    %v2206 = vpack.c.b16 %v2161, %v2160
    %v2207 = vpack.c.b16 %v2163, %v2162
    %v2208 = vpack.c.b16 %v2165, %v2164
    %v2209 = vpack.c.b16 %v2167, %v2166
    %v2210 = vpack.c.b16 %v2169, %v2168
    %v2211 = vpack.c.b16 %v2171, %v2170
    %v2212 = vpack.c.b16 %v2173, %v2172
    %v2213 = vpack.c.b16 %v2175, %v2174
    %2252 = vst [vmem:[#allocation2] sm:$0xff] %v2176
    %2253 = vst [vmem:[#allocation2 + $0x8] sm:$0xff] %v2177
    %2254 = vst [vmem:[#allocation2 + $0x10] sm:$0xff] %v2178
    %2255 = vst [vmem:[#allocation2 + $0x18] sm:$0xff] %v2179
    %2256 = vst [vmem:[#allocation2 + $0x20] sm:$0xff] %v2180
    %2257 = vst [vmem:[#allocation2 + $0x28] sm:$0xff] %v2181
    %2258 = vst [vmem:[#allocation2 + $0x30] sm:$0xff] %v2182
    %2259 = vst [vmem:[#allocation2 + $0x38] sm:$0xff] %v2183
    %2260 = vst [vmem:[#allocation2 + $0x40] sm:$0xff] %v2184
    %2261 = vst [vmem:[#allocation2 + $0x48] sm:$0xff] %v2185
    %2262 = vst [vmem:[#allocation2 + $0x50] sm:$0xff] %v2186
    %2263 = vst [vmem:[#allocation2 + $0x58] sm:$0xff] %v2187
    %2264 = vst [vmem:[#allocation2 + $0x60] sm:$0xff] %v2188
    %2265 = vst [vmem:[#allocation2 + $0x68] sm:$0xff] %v2189
    %2266 = vst [vmem:[#allocation2 + $0x70] sm:$0xff] %v2190
    %2267 = vst [vmem:[#allocation2 + $0x78] sm:$0xff] %v2191
    %2268 = vst [vmem:[#allocation2 + $0x80] sm:$0xff] %v2192
    %2269 = vst [vmem:[#allocation2 + $0x88] sm:$0xff] %v2193
    %2270 = vst [vmem:[#allocation2 + $0x90] sm:$0xff] %v2194
    %2271 = vst [vmem:[#allocation2 + $0x98] sm:$0xff] %v2195
    %2272 = vst [vmem:[#allocation2 + $0xa0] sm:$0xff] %v2196
    %2273 = vst [vmem:[#allocation2 + $0xa8] sm:$0xff] %v2197
    %2274 = vst [vmem:[#allocation2 + $0xb0] sm:$0xff] %v2198
    %2275 = vst [vmem:[#allocation2 + $0xb8] sm:$0xff] %v2199
    %2276 = vst [vmem:[#allocation2 + $0xc0] sm:$0xff] %v2200
    %2277 = vst [vmem:[#allocation2 + $0xc8] sm:$0xff] %v2201
    %2278 = vst [vmem:[#allocation2 + $0xd0] sm:$0xff] %v2202
    %2279 = vst [vmem:[#allocation2 + $0xd8] sm:$0xff] %v2203
    %2280 = vst [vmem:[#allocation2 + $0xe0] sm:$0xff] %v2204
    %2281 = vst [vmem:[#allocation2 + $0xe8] sm:$0xff] %v2205
    %2282 = vst [vmem:[#allocation2 + $0xf0] sm:$0xff] %v2206
    %2283 = vst [vmem:[#allocation2 + $0xf8] sm:$0xff] %v2207
    %2284 = vst [vmem:[#allocation2 + $0x100] sm:$0xff] %v2208
    %2285 = vst [vmem:[#allocation2 + $0x108] sm:$0xff] %v2209
    %2286 = vst [vmem:[#allocation2 + $0x110] sm:$0xff] %v2210
    %2287 = vst [vmem:[#allocation2 + $0x118] sm:$0xff] %v2211
    %2288 = vst [vmem:[#allocation2 + $0x120] sm:$0xff] %v2212
    %2289 = vst [vmem:[#allocation2 + $0x128] sm:$0xff] %v2213
    %v2290 = vld [vmem:[%s7] sm:$0xf]
    %v2291 = vld [vmem:[%s7 + $0x4] sm:$0xf]
    %v2292 = vld [vmem:[%s7 + $0x8] sm:$0xf]
    %v2293 = vld [vmem:[%s7 + $0xc] sm:$0xf]
    %v2294 = vld [vmem:[%s7 + $0x10] sm:$0xf]
    %v2295 = vld [vmem:[%s7 + $0x14] sm:$0xf]
    %v2296 = vld [vmem:[%s7 + $0x18] sm:$0xf]
    %v2297 = vld [vmem:[%s7 + $0x1c] sm:$0xf]
    %v2298 = vld [vmem:[%s7 + $0x20] sm:$0xf]
    %v2299 = vld [vmem:[%s7 + $0x24] sm:$0xf]
    %v2300 = vld [vmem:[%s7 + $0x28] sm:$0xf]
    %v2301 = vld [vmem:[%s7 + $0x2c] sm:$0xf]
    %v2302 = vld [vmem:[%s7 + $0x30] sm:$0xf]
    %v2303 = vld [vmem:[%s7 + $0x34] sm:$0xf]
    %v2304 = vld [vmem:[%s7 + $0x38] sm:$0xf]
    %v2305 = vld [vmem:[%s7 + $0x3c] sm:$0xf]
    %v2306 = vld [vmem:[%s7 + $0x40] sm:$0xf]
    %v2307 = vld [vmem:[%s7 + $0x44] sm:$0xf]
    %v2308 = vld [vmem:[%s7 + $0x48] sm:$0xf]
    %v2309 = vld [vmem:[%s7 + $0x4c] sm:$0xf]
    %v2310 = vld [vmem:[%s7 + $0x50] sm:$0xf]
    %v2311 = vld [vmem:[%s7 + $0x54] sm:$0xf]
    %v2312 = vld [vmem:[%s7 + $0x58] sm:$0xf]
    %v2313 = vld [vmem:[%s7 + $0x5c] sm:$0xf]
    %v2314 = vld [vmem:[%s7 + $0x60] sm:$0xf]
    %v2315 = vld [vmem:[%s7 + $0x64] sm:$0xf]
    %v2316 = vld [vmem:[%s7 + $0x68] sm:$0xf]
    %v2317 = vld [vmem:[%s7 + $0x6c] sm:$0xf]
    %v2318 = vld [vmem:[%s7 + $0x70] sm:$0xf]
    %v2319 = vld [vmem:[%s7 + $0x74] sm:$0xf]
    %v2320 = vld [vmem:[%s7 + $0x78] sm:$0xf]
    %v2321 = vld [vmem:[%s7 + $0x7c] sm:$0xf]
    %v2322 = vld [vmem:[%s8] sm:$0x1]
    %v2324 = vlaneseq
    %v2325 = vshrl.u32 %v2324, 7
    %v2326 = vsub.s32 0, %v2325
    %v2327 = vrot.slane %v2322, %v2326
    %v2361 = vunpack.c.l.b16 %v2290
    %v2362 = vunpack.c.l.b16 %v2291
    %v2363 = vunpack.c.l.b16 %v2292
    %v2364 = vunpack.c.l.b16 %v2293
    %v2365 = vunpack.c.l.b16 %v2294
    %v2366 = vunpack.c.l.b16 %v2295
    %v2367 = vunpack.c.l.b16 %v2296
    %v2368 = vunpack.c.l.b16 %v2297
    %v2369 = vunpack.c.l.b16 %v2298
    %v2370 = vunpack.c.l.b16 %v2299
    %v2371 = vunpack.c.l.b16 %v2300
    %v2372 = vunpack.c.l.b16 %v2301
    %v2373 = vunpack.c.l.b16 %v2302
    %v2374 = vunpack.c.l.b16 %v2303
    %v2375 = vunpack.c.l.b16 %v2304
    %v2376 = vunpack.c.l.b16 %v2305
    %v2377 = vunpack.c.l.b16 %v2306
    %v2378 = vunpack.c.l.b16 %v2307
    %v2379 = vunpack.c.l.b16 %v2308
    %v2380 = vunpack.c.l.b16 %v2309
    %v2381 = vunpack.c.l.b16 %v2310
    %v2382 = vunpack.c.l.b16 %v2311
    %v2383 = vunpack.c.l.b16 %v2312
    %v2384 = vunpack.c.l.b16 %v2313
    %v2385 = vunpack.c.l.b16 %v2314
    %v2386 = vunpack.c.l.b16 %v2315
    %v2387 = vunpack.c.l.b16 %v2316
    %v2388 = vunpack.c.l.b16 %v2317
    %v2389 = vunpack.c.l.b16 %v2318
    %v2390 = vunpack.c.l.b16 %v2319
    %v2391 = vunpack.c.l.b16 %v2320
    %v2392 = vunpack.c.l.b16 %v2321
    %v2393 = vpack.c.b16 %v2362, %v2361
    %v2394 = vpack.c.b16 %v2364, %v2363
    %v2395 = vpack.c.b16 %v2366, %v2365
    %v2396 = vpack.c.b16 %v2368, %v2367
    %v2397 = vpack.c.b16 %v2370, %v2369
    %v2398 = vpack.c.b16 %v2372, %v2371
    %v2399 = vpack.c.b16 %v2374, %v2373
    %v2400 = vpack.c.b16 %v2376, %v2375
    %v2401 = vpack.c.b16 %v2378, %v2377
    %v2402 = vpack.c.b16 %v2380, %v2379
    %v2403 = vpack.c.b16 %v2382, %v2381
    %v2404 = vpack.c.b16 %v2384, %v2383
    %v2405 = vpack.c.b16 %v2386, %v2385
    %v2406 = vpack.c.b16 %v2388, %v2387
    %v2407 = vpack.c.b16 %v2390, %v2389
    %v2408 = vpack.c.b16 %v2392, %v2391
    %2425 = vmatprep.subr.bf16.mxu0 0
    %2426 = vmatpush1.bf16.msra.mxu0 %v2393
    %2427 = vmatprep.subr.bf16.mxu0 0
    %2428 = vmatpush1.bf16.msra.mxu0 %v2394
    %2429 = vmatprep.subr.bf16.mxu0 0
    %2430 = vmatpush1.bf16.msra.mxu0 %v2395
    %2431 = vmatprep.subr.bf16.mxu0 0
    %2432 = vmatpush1.bf16.msra.mxu0 %v2396
    %2433 = vmatprep.subr.bf16.mxu0 0
    %2434 = vmatpush1.bf16.msra.mxu0 %v2397
    %2435 = vmatprep.subr.bf16.mxu0 0
    %2436 = vmatpush1.bf16.msra.mxu0 %v2398
    %2437 = vmatprep.subr.bf16.mxu0 0
    %2438 = vmatpush1.bf16.msra.mxu0 %v2399
    %2439 = vmatprep.subr.bf16.mxu0 0
    %2440 = vmatpush1.bf16.msra.mxu0 %v2400
    %2441 = vmatprep.subr.bf16.mxu0 0
    %2442 = vmatpush1.bf16.msra.mxu0 %v2401
    %2443 = vmatprep.subr.bf16.mxu0 0
    %2444 = vmatpush1.bf16.msra.mxu0 %v2402
    %2445 = vmatprep.subr.bf16.mxu0 0
    %2446 = vmatpush1.bf16.msra.mxu0 %v2403
    %2447 = vmatprep.subr.bf16.mxu0 0
    %2448 = vmatpush1.bf16.msra.mxu0 %v2404
    %2449 = vmatprep.subr.bf16.mxu0 0
    %2450 = vmatpush1.bf16.msra.mxu0 %v2405
    %2451 = vmatprep.subr.bf16.mxu0 0
    %2452 = vmatpush1.bf16.msra.mxu0 %v2406
    %2453 = vmatprep.subr.bf16.mxu0 0
    %2454 = vmatpush1.bf16.msra.mxu0 %v2407
    %2455 = vmatprep.subr.bf16.mxu0 0
    %2456 = vmatpush1.bf16.msra.mxu0 %v2408
    %2457 = vmatprep.mubr.bf16.mxu0 %v2025
    %2458 = vmatmul.mubr.bf16.gmra.mrb[0].mxu0 %v2024
    %v2459 = vpop.f32.mrb[0].mxu0
    %v2460 = vadd.f32 %v2327, %v2459
    %v2461 = vpop.f32.mrb[0].mxu0
    %v2462 = vpop.f32.mrb[0].mxu0
    %v2463 = vadd.f32 %v2327, %v2462
    %v2464 = vpop.f32.mrb[0].mxu0
    %2465 = vmatprep.mubr.bf16.mxu0 %v2027
    %2466 = vmatmul.mubr.bf16.gmra.mrb[0].mxu0 %v2026
    %v2467 = vpop.f32.mrb[0].mxu0
    %v2468 = vadd.f32 %v2327, %v2467
    %v2469 = vpop.f32.mrb[0].mxu0
    %v2470 = vpop.f32.mrb[0].mxu0
    %v2471 = vadd.f32 %v2327, %v2470
    %v2472 = vpop.f32.mrb[0].mxu0
    %2473 = vmatprep.mubr.bf16.mxu0 %v2029
    %2474 = vmatmul.mubr.bf16.gmra.mrb[0].mxu0 %v2028
    %v2475 = vpop.f32.mrb[0].mxu0
    %v2476 = vadd.f32 %v2327, %v2475
    %v2477 = vpop.f32.mrb[0].mxu0
    %v2478 = vpop.f32.mrb[0].mxu0
    %v2479 = vadd.f32 %v2327, %v2478
    %v2480 = vpop.f32.mrb[0].mxu0
    %2481 = vmatprep.mubr.bf16.mxu0 %v2031
    %2482 = vmatmul.mubr.bf16.gmra.mrb[0].mxu0 %v2030
    %v2483 = vpop.f32.mrb[0].mxu0
    %v2484 = vadd.f32 %v2327, %v2483
    %v2485 = vpop.f32.mrb[0].mxu0
    %v2486 = vpop.f32.mrb[0].mxu0
    %v2487 = vadd.f32 %v2327, %v2486
    %v2488 = vpop.f32.mrb[0].mxu0
    %2489 = vmatprep.mubr.bf16.mxu0 %v2033
    %2490 = vmatmul.mubr.bf16.gmra.mrb[0].mxu0 %v2032
    %v2491 = vpop.f32.mrb[0].mxu0
    %v2492 = vadd.f32 %v2327, %v2491
    %v2493 = vpop.f32.mrb[0].mxu0
    %v2494 = vpop.f32.mrb[0].mxu0
    %v2495 = vadd.f32 %v2327, %v2494
    %v2496 = vpop.f32.mrb[0].mxu0
    %2497 = vmatprep.mubr.bf16.mxu0 %v2035
    %2498 = vmatmul.mubr.bf16.gmra.mrb[0].mxu0 %v2034
    %v2499 = vpop.f32.mrb[0].mxu0
    %v2500 = vadd.f32 %v2327, %v2499
    %v2501 = vpop.f32.mrb[0].mxu0
    %v2502 = vpop.f32.mrb[0].mxu0
    %v2503 = vadd.f32 %v2327, %v2502
    %v2504 = vpop.f32.mrb[0].mxu0
    %2505 = vmatprep.mubr.bf16.mxu0 %v2037
    %2506 = vmatmul.mubr.bf16.gmra.mrb[0].mxu0 %v2036
    %v2507 = vpop.f32.mrb[0].mxu0
    %v2508 = vadd.f32 %v2327, %v2507
    %v2509 = vpop.f32.mrb[0].mxu0
    %v2510 = vpop.f32.mrb[0].mxu0
    %v2511 = vadd.f32 %v2327, %v2510
    %v2512 = vpop.f32.mrb[0].mxu0
    %2513 = vmatprep.mubr.bf16.mxu0 %v2039
    %2514 = vmatmul.mubr.bf16.gmra.mrb[0].mxu0 %v2038
    %v2515 = vpop.f32.mrb[0].mxu0
    %v2516 = vadd.f32 %v2327, %v2515
    %v2517 = vpop.f32.mrb[0].mxu0
    %v2518 = vpop.f32.mrb[0].mxu0
    %v2519 = vadd.f32 %v2327, %v2518
    %v2520 = vpop.f32.mrb[0].mxu0
    %2521 = vmatprep.mubr.bf16.mxu0 %v2041
    %2522 = vmatmul.mubr.bf16.gmra.mrb[0].mxu0 %v2040
    %v2523 = vpop.f32.mrb[0].mxu0
    %v2524 = vadd.f32 %v2327, %v2523
    %v2525 = vpop.f32.mrb[0].mxu0
    %v2526 = vpop.f32.mrb[0].mxu0
    %v2527 = vadd.f32 %v2327, %v2526
    %v2528 = vpop.f32.mrb[0].mxu0
    %2529 = vmatprep.mubr.bf16.mxu0 %v2043
    %2530 = vmatmul.mubr.bf16.gmra.mrb[0].mxu0 %v2042
    %v2531 = vpop.f32.mrb[0].mxu0
    %v2532 = vadd.f32 %v2327, %v2531
    %v2533 = vpop.f32.mrb[0].mxu0
    %v2534 = vpop.f32.mrb[0].mxu0
    %v2535 = vadd.f32 %v2327, %v2534
    %v2536 = vpop.f32.mrb[0].mxu0
    %2537 = vmatprep.mubr.bf16.mxu0 %v2045
    %2538 = vmatmul.mubr.bf16.gmra.mrb[0].mxu0 %v2044
    %v2539 = vpop.f32.mrb[0].mxu0
    %v2540 = vadd.f32 %v2327, %v2539
    %v2541 = vpop.f32.mrb[0].mxu0
    %v2542 = vpop.f32.mrb[0].mxu0
    %v2543 = vadd.f32 %v2327, %v2542
    %v2544 = vpop.f32.mrb[0].mxu0
    %2545 = vmatprep.mubr.bf16.mxu0 %v2047
    %2546 = vmatmul.mubr.bf16.gmra.mrb[0].mxu0 %v2046
    %v2547 = vpop.f32.mrb[0].mxu0
    %v2548 = vadd.f32 %v2327, %v2547
    %v2549 = vpop.f32.mrb[0].mxu0
    %v2550 = vpop.f32.mrb[0].mxu0
    %v2551 = vadd.f32 %v2327, %v2550
    %v2552 = vpop.f32.mrb[0].mxu0
    %2553 = vmatprep.mubr.bf16.mxu0 %v2049
    %2554 = vmatmul.mubr.bf16.gmra.mrb[0].mxu0 %v2048
    %v2555 = vpop.f32.mrb[0].mxu0
    %v2556 = vadd.f32 %v2327, %v2555
    %v2557 = vpop.f32.mrb[0].mxu0
    %v2558 = vpop.f32.mrb[0].mxu0
    %v2559 = vadd.f32 %v2327, %v2558
    %v2560 = vpop.f32.mrb[0].mxu0
    %2561 = vmatprep.mubr.bf16.mxu0 %v2051
    %2562 = vmatmul.mubr.bf16.gmra.mrb[0].mxu0 %v2050
    %v2563 = vpop.f32.mrb[0].mxu0
    %v2564 = vadd.f32 %v2327, %v2563
    %v2565 = vpop.f32.mrb[0].mxu0
    %v2566 = vpop.f32.mrb[0].mxu0
    %v2567 = vadd.f32 %v2327, %v2566
    %v2568 = vpop.f32.mrb[0].mxu0
    %2569 = vmatprep.mubr.bf16.mxu0 %v2053
    %2570 = vmatmul.mubr.bf16.gmra.mrb[0].mxu0 %v2052
    %v2571 = vpop.f32.mrb[0].mxu0
    %v2572 = vadd.f32 %v2327, %v2571
    %v2573 = vpop.f32.mrb[0].mxu0
    %v2574 = vpop.f32.mrb[0].mxu0
    %v2575 = vadd.f32 %v2327, %v2574
    %v2576 = vpop.f32.mrb[0].mxu0
    %2577 = vmatprep.mubr.bf16.mxu0 %v2055
    %2578 = vmatmul.mubr.bf16.gmra.mrb[0].mxu0 %v2054
    %v2579 = vpop.f32.mrb[0].mxu0
    %v2580 = vadd.f32 %v2327, %v2579
    %v2581 = vpop.f32.mrb[0].mxu0
    %v2582 = vpop.f32.mrb[0].mxu0
    %v2583 = vadd.f32 %v2327, %v2582
    %v2584 = vpop.f32.mrb[0].mxu0
    %2585 = vmatprep.mubr.bf16.mxu0 %v2057
    %2586 = vmatmul.mubr.bf16.gmra.mrb[0].mxu0 %v2056
    %v2587 = vpop.f32.mrb[0].mxu0
    %v2588 = vadd.f32 %v2327, %v2587
    %v2589 = vpop.f32.mrb[0].mxu0
    %v2590 = vpop.f32.mrb[0].mxu0
    %v2591 = vadd.f32 %v2327, %v2590
    %v2592 = vpop.f32.mrb[0].mxu0
    %2593 = vmatprep.mubr.bf16.mxu0 %v2059
    %2594 = vmatmul.mubr.bf16.gmra.mrb[0].mxu0 %v2058
    %v2595 = vpop.f32.mrb[0].mxu0
    %v2596 = vadd.f32 %v2327, %v2595
    %v2597 = vpop.f32.mrb[0].mxu0
    %v2598 = vpop.f32.mrb[0].mxu0
    %v2599 = vadd.f32 %v2327, %v2598
    %v2600 = vpop.f32.mrb[0].mxu0
    %2601 = vmatprep.mubr.bf16.mxu0 %v2061
    %2602 = vmatmul.mubr.bf16.gmra.mrb[0].mxu0 %v2060
    %v2603 = vpop.f32.mrb[0].mxu0
    %v2604 = vadd.f32 %v2327, %v2603
    %v2605 = vpop.f32.mrb[0].mxu0
    %v2606 = vpop.f32.mrb[0].mxu0
    %v2607 = vadd.f32 %v2327, %v2606
    %v2608 = vpop.f32.mrb[0].mxu0
    %2609 = vdwg.mxu0
    %v2610 = vpack.c.bf16 %v2463, %v2460
    %v2611 = vpack.c.bf16 %v2471, %v2468
    %v2612 = vpack.c.bf16 %v2479, %v2476
    %v2613 = vpack.c.bf16 %v2487, %v2484
    %v2614 = vpack.c.bf16 %v2495, %v2492
    %v2615 = vpack.c.bf16 %v2503, %v2500
    %v2616 = vpack.c.bf16 %v2511, %v2508
    %v2617 = vpack.c.bf16 %v2519, %v2516
    %v2618 = vpack.c.bf16 %v2527, %v2524
    %v2619 = vpack.c.bf16 %v2535, %v2532
    %v2620 = vpack.c.bf16 %v2543, %v2540
    %v2621 = vpack.c.bf16 %v2551, %v2548
    %v2622 = vpack.c.bf16 %v2559, %v2556
    %v2623 = vpack.c.bf16 %v2567, %v2564
    %v2624 = vpack.c.bf16 %v2575, %v2572
    %v2625 = vpack.c.bf16 %v2583, %v2580
    %v2626 = vpack.c.bf16 %v2591, %v2588
    %v2627 = vpack.c.bf16 %v2599, %v2596
    %v2628 = vpack.c.bf16 %v2607, %v2604
    %v2648 = vunpack.c.l.b16 %v2610
    %v2649 = vunpack.c.h.b16 %v2610
    %v2650 = vunpack.c.l.b16 %v2611
    %v2651 = vunpack.c.h.b16 %v2611
    %v2652 = vunpack.c.l.b16 %v2612
    %v2653 = vunpack.c.h.b16 %v2612
    %v2654 = vunpack.c.l.b16 %v2613
    %v2655 = vunpack.c.h.b16 %v2613
    %v2656 = vunpack.c.l.b16 %v2614
    %v2657 = vunpack.c.h.b16 %v2614
    %v2658 = vunpack.c.l.b16 %v2615
    %v2659 = vunpack.c.h.b16 %v2615
    %v2660 = vunpack.c.l.b16 %v2616
    %v2661 = vunpack.c.h.b16 %v2616
    %v2662 = vunpack.c.l.b16 %v2617
    %v2663 = vunpack.c.h.b16 %v2617
    %v2664 = vunpack.c.l.b16 %v2618
    %v2665 = vunpack.c.h.b16 %v2618
    %v2666 = vunpack.c.l.b16 %v2619
    %v2667 = vunpack.c.h.b16 %v2619
    %v2668 = vunpack.c.l.b16 %v2620
    %v2669 = vunpack.c.h.b16 %v2620
    %v2670 = vunpack.c.l.b16 %v2621
    %v2671 = vunpack.c.h.b16 %v2621
    %v2672 = vunpack.c.l.b16 %v2622
    %v2673 = vunpack.c.h.b16 %v2622
    %v2674 = vunpack.c.l.b16 %v2623
    %v2675 = vunpack.c.h.b16 %v2623
    %v2676 = vunpack.c.l.b16 %v2624
    %v2677 = vunpack.c.h.b16 %v2624
    %v2678 = vunpack.c.l.b16 %v2625
    %v2679 = vunpack.c.h.b16 %v2625
    %v2680 = vunpack.c.l.b16 %v2626
    %v2681 = vunpack.c.h.b16 %v2626
    %v2682 = vunpack.c.l.b16 %v2627
    %v2683 = vunpack.c.h.b16 %v2627
    %v2684 = vunpack.c.l.b16 %v2628
    %v2685 = vunpack.c.h.b16 %v2628
    %v2686 = vpack.c.b16 %v2648, %v2648
    %v2687 = vpack.c.b16 %v2649, %v2649
    %v2688 = vpack.c.b16 %v2650, %v2650
    %v2689 = vpack.c.b16 %v2651, %v2651
    %v2690 = vpack.c.b16 %v2652, %v2652
    %v2691 = vpack.c.b16 %v2653, %v2653
    %v2692 = vpack.c.b16 %v2654, %v2654
    %v2693 = vpack.c.b16 %v2655, %v2655
    %v2694 = vpack.c.b16 %v2656, %v2656
    %v2695 = vpack.c.b16 %v2657, %v2657
    %v2696 = vpack.c.b16 %v2658, %v2658
    %v2697 = vpack.c.b16 %v2659, %v2659
    %v2698 = vpack.c.b16 %v2660, %v2660
    %v2699 = vpack.c.b16 %v2661, %v2661
    %v2700 = vpack.c.b16 %v2662, %v2662
    %v2701 = vpack.c.b16 %v2663, %v2663
    %v2702 = vpack.c.b16 %v2664, %v2664
    %v2703 = vpack.c.b16 %v2665, %v2665
    %v2704 = vpack.c.b16 %v2666, %v2666
    %v2705 = vpack.c.b16 %v2667, %v2667
    %v2706 = vpack.c.b16 %v2668, %v2668
    %v2707 = vpack.c.b16 %v2669, %v2669
    %v2708 = vpack.c.b16 %v2670, %v2670
    %v2709 = vpack.c.b16 %v2671, %v2671
    %v2710 = vpack.c.b16 %v2672, %v2672
    %v2711 = vpack.c.b16 %v2673, %v2673
    %v2712 = vpack.c.b16 %v2674, %v2674
    %v2713 = vpack.c.b16 %v2675, %v2675
    %v2714 = vpack.c.b16 %v2676, %v2676
    %v2715 = vpack.c.b16 %v2677, %v2677
    %v2716 = vpack.c.b16 %v2678, %v2678
    %v2717 = vpack.c.b16 %v2679, %v2679
    %v2718 = vpack.c.b16 %v2680, %v2680
    %v2719 = vpack.c.b16 %v2681, %v2681
    %v2720 = vpack.c.b16 %v2682, %v2682
    %v2721 = vpack.c.b16 %v2683, %v2683
    %v2722 = vpack.c.b16 %v2684, %v2684
    %v2723 = vpack.c.b16 %v2685, %v2685
    %2762 = vst [vmem:[%s9] sm:$0xf] %v2686
    %2763 = vst [vmem:[%s9 + $0x4] sm:$0xf] %v2687
    %2764 = vst [vmem:[%s9 + $0x8] sm:$0xf] %v2688
    %2765 = vst [vmem:[%s9 + $0xc] sm:$0xf] %v2689
    %2766 = vst [vmem:[%s9 + $0x10] sm:$0xf] %v2690
    %2767 = vst [vmem:[%s9 + $0x14] sm:$0xf] %v2691
    %2768 = vst [vmem:[%s9 + $0x18] sm:$0xf] %v2692
    %2769 = vst [vmem:[%s9 + $0x1c] sm:$0xf] %v2693
    %2770 = vst [vmem:[%s9 + $0x20] sm:$0xf] %v2694
    %2771 = vst [vmem:[%s9 + $0x24] sm:$0xf] %v2695
    %2772 = vst [vmem:[%s9 + $0x28] sm:$0xf] %v2696
    %2773 = vst [vmem:[%s9 + $0x2c] sm:$0xf] %v2697
    %2774 = vst [vmem:[%s9 + $0x30] sm:$0xf] %v2698
    %2775 = vst [vmem:[%s9 + $0x34] sm:$0xf] %v2699
    %2776 = vst [vmem:[%s9 + $0x38] sm:$0xf] %v2700
    %2777 = vst [vmem:[%s9 + $0x3c] sm:$0xf] %v2701
    %2778 = vst [vmem:[%s9 + $0x40] sm:$0xf] %v2702
    %2779 = vst [vmem:[%s9 + $0x44] sm:$0xf] %v2703
    %2780 = vst [vmem:[%s9 + $0x48] sm:$0xf] %v2704
    %2781 = vst [vmem:[%s9 + $0x4c] sm:$0xf] %v2705
    %2782 = vst [vmem:[%s9 + $0x50] sm:$0xf] %v2706
    %2783 = vst [vmem:[%s9 + $0x54] sm:$0xf] %v2707
    %2784 = vst [vmem:[%s9 + $0x58] sm:$0xf] %v2708
    %2785 = vst [vmem:[%s9 + $0x5c] sm:$0xf] %v2709
    %2786 = vst [vmem:[%s9 + $0x60] sm:$0xf] %v2710
    %2787 = vst [vmem:[%s9 + $0x64] sm:$0xf] %v2711
    %2788 = vst [vmem:[%s9 + $0x68] sm:$0xf] %v2712
    %2789 = vst [vmem:[%s9 + $0x6c] sm:$0xf] %v2713
    %2790 = vst [vmem:[%s9 + $0x70] sm:$0xf] %v2714
    %2791 = vst [vmem:[%s9 + $0x74] sm:$0xf] %v2715
    %2792 = vst [vmem:[%s9 + $0x78] sm:$0xf] %v2716
    %2793 = vst [vmem:[%s9 + $0x7c] sm:$0xf] %v2717
    %2794 = vst [vmem:[%s9 + $0x80] sm:$0xf] %v2718
    %2795 = vst [vmem:[%s9 + $0x84] sm:$0xf] %v2719
    %2796 = vst [vmem:[%s9 + $0x88] sm:$0xf] %v2720
    %2797 = vst [vmem:[%s9 + $0x8c] sm:$0xf] %v2721
    %2798 = vst [vmem:[%s9 + $0x90] sm:$0xf] %v2722
    %2799 = vst [vmem:[%s9 + $0x94] sm:$0xf] %v2723
    // Predicated region
    $region38: #{mlp_forward.1} parent=1 // pred_check
      _
    $region39: #{mlp_forward.1} parent=1 // pred_check_branch
      %2801 = sbr.rel (0) target = $region41
    $region40: #{mlp_forward.1} parent=1 // pred_region
      _
    $region41: #{mlp_forward.1} parent=1 // pred_fallthru
      _
    // Predicated region
    $region42: #{mlp_forward.1} parent=1 // pred_check
      _
    $region43: #{mlp_forward.1} parent=1 // pred_check_branch
      %2803 = sbr.rel (0) target = $region45
    $region44: #{mlp_forward.1} parent=1 // pred_region
      %s2805 = ssub.s32 4864, 4864
      %2806 = vsyncadd [#allocation3], %s2805
      %s2807 = sshll.u32 [#allocation2], 4
      %s2808 = int_to_ptr.vmem [resolvable:$true] %s2807
      %2813 = dma.vmem_to_hbm [thread:$0]  %s2808, 4864, %s10, [#allocation3], 128, 128, 8
    $region45: #{mlp_forward.1} parent=1 // pred_fallthru
      _
    // Predicated region
    $region46: #{mlp_forward.1} parent=1 // pred_check
      _
    $region47: #{mlp_forward.1} parent=1 // pred_check_branch
      %2815 = sbr.rel (0) target = $region49
    $region48: #{mlp_forward.1} parent=1 // pred_region
      _
    $region49: #{mlp_forward.1} parent=1 // pred_fallthru
      _
    // Predicated region
    $region50: #{mlp_forward.1} parent=1 // pred_check
      _
    $region51: #{mlp_forward.1} parent=1 // pred_check_branch
      %2817 = sbr.rel (0) target = $region53
    $region52: #{mlp_forward.1} parent=1 // pred_region
      %2818 = dma.done [#allocation3], 4864
    $region53: #{mlp_forward.1} parent=1 // pred_fallthru
      _
    %2819 = vsyncpa [#allocation3], 1

</llo_original>
